<compile_context>
chip_gen: v6e
topology: v6e:2x2x1
jax: 0.10.0
libtpu: 0.0.40
codegen_flags: <defaults>
</compile_context>

<pallas_src>
import functools

import jax
import jax.numpy as jnp
from jax.experimental import pallas as pl
from jax.experimental.pallas import tpu as pltpu


# ----------------------------------------------------------------------------
# Fused forward kernel: one grid step == one graph.
# ----------------------------------------------------------------------------
def _fused_forward_kernel(D, H, L, RB,
                          nf_ref, adj_ref, ew_ref,
                          node_w_ref, node_b_ref,
                          wvf_ref, bvf_ref, wga_ref,
                          w1ab_ref, b1_ref, w2_ref, b2_ref,
                          logits_ref, loss_ref,
                          a_scr, b_scr):
    nf = nf_ref[...]                                   # (N, 3)
    adj = adj_ref[...]                                 # (N, N)
    N = adj.shape[0]

    # ---- node embedding: K=3 done as 3 VPU broadcast-FMAs (not an MXU push)
    h = (nf[:, 0:1] * node_w_ref[0:1, :]
         + nf[:, 1:2] * node_w_ref[1:2, :]
         + nf[:, 2:3] * node_w_ref[2:3, :]
         + node_b_ref[...])                            # (N, D)

    # ---- residual gated GCN stack (h stays vreg/VMEM resident) ------------
    for l in range(L):                                 # static, unrolled (L tiny)
        # One fused matmul producing [v | pregate]; Wu was folded through the
        # gate at init, so no concat([u, agg]) and the gate matmul has K = D.
        vp = (jnp.dot(h, wvf_ref[l], preferred_element_type=jnp.float32)
              + bvf_ref[l])                            # (N, 2D)
        v = vp[:, :D]
        pre = vp[:, D:]
        agg = jnp.dot(adj, v, preferred_element_type=jnp.float32)      # (N, D)
        gate = jax.nn.sigmoid(
            pre + jnp.dot(agg, wga_ref[l], preferred_element_type=jnp.float32))
        h = jnp.maximum(h + gate * agg, 0.0)           # residual + relu

    # ---- pairwise edge classifier ------------------------------------------
    # hidden[i, j] = relu(h[i] @ W1a + h[j] @ W1b + b1); single 2H-wide push.
    ab = jnp.dot(h, w1ab_ref[...], preferred_element_type=jnp.float32)  # (N,2H)
    a_scr[...] = ab[:, :H] + b1_ref[...]   # b1 hoisted out of the N^2 region
    b_scr[...] = ab[:, H:]

    bfull = b_scr[...]                                 # (N, H)
    w2 = w2_ref[...]                                   # (1, H)
    b2 = b2_ref[0]                                     # scalar (SMEM)

    # Blockwise over RB-row sublane blocks: the (N, N, H) hidden tensor is
    # never materialized, keeping vreg/VMEM pressure bounded as N grows.
    def body(i, acc):
        r0 = pl.multiple_of(i * RB, RB)
        a_blk = a_scr[pl.ds(r0, RB), :]                               # (RB, H)
        hid = jnp.maximum(a_blk[:, None, :] + bfull[None, :, :], 0.0)  # (RB,N,H)
        # Linear(H, 1) as a VPU multiply + lane reduction (no 1-col matmul).
        lg = jnp.sum(hid * w2, axis=-1) + b2                          # (RB, N)
        logits_ref[pl.ds(r0, RB), :] = lg
        d = lg * adj_ref[pl.ds(r0, RB), :] - ew_ref[pl.ds(r0, RB), :]
        return acc + jnp.sum(d * d)

    sq = jax.lax.fori_loop(0, N // RB, body, jnp.zeros((1, 1), jnp.float32))
    # MSE loss: mean((logits * adj - ew)^2) over all N*N entries.
    loss_ref[...] = sq * (1.0 / float(N * N))


# ----------------------------------------------------------------------------
# Parameter init (deterministic; mirrors nn.Linear shapes, weights stored as
# (in, out); GCN-layer weights are pre-folded/fused for the kernel).
# ----------------------------------------------------------------------------
def _lin_init(key, fan_in, fan_out):
    k1, k2 = jax.random.split(key)
    bound = 1.0 / (fan_in ** 0.5)
    w = jax.random.uniform(k1, (fan_in, fan_out), jnp.float32, -bound, bound)
    b = jax.random.uniform(k2, (1, fan_out), jnp.float32, -bound, bound)
    return w, b


def init_params(key, node_dim=32, edge_dim=32, num_layers=3, cls_hidden=128):
    keys = jax.random.split(key, 4 + num_layers)
    node_w, node_b = _lin_init(keys[0], 3, node_dim)
    # edge_embed exists in the torch module but its output is unused in
    # forward(); parameters kept for structural fidelity, never executed.
    edge_w, edge_b = _lin_init(keys[1], 1, edge_dim)

    hp = jax.lax.Precision.HIGHEST
    raw_layers = []
    wvf, bvf, wga = [], [], []
    for l in range(num_layers):
        ku, kv, kg = jax.random.split(keys[2 + l], 3)
        wu, bu = _lin_init(ku, node_dim, node_dim)
        wv, bv = _lin_init(kv, node_dim, node_dim)
        wg, bg = _lin_init(kg, 2 * node_dim, node_dim)   # gate: Linear(2D, D)
        raw_layers.append((wu, bu, wv, bv, wg, bg))
        # Fold Wu through the gate:  u @ Wg[:D] = h @ (Wu@Wg[:D]) + bu@Wg[:D]
        wg_u, wg_a = wg[:node_dim], wg[node_dim:]
        w_fold = jnp.dot(wu, wg_u, precision=hp)                     # (D, D)
        b_fold = jnp.dot(bu, wg_u, precision=hp) + bg                # (1, D)
        wvf.append(jnp.concatenate([wv, w_fold], axis=1))            # (D, 2D)
        bvf.append(jnp.concatenate([bv, b_fold], axis=1))            # (1, 2D)
        wga.append(wg_a)                                             # (D, D)

    k1, k2 = jax.random.split(keys[2 + num_layers], 2)
    w1, b1 = _lin_init(k1, 2 * node_dim, cls_hidden)     # Linear(2D, H)
    w2, b2 = _lin_init(k2, cls_hidden, 1)                # Linear(H, 1)

    params = dict(
        node_w=node_w, node_b=node_b,
        edge_w=edge_w, edge_b=edge_b,                    # dead in reference fwd
        wvf=jnp.stack(wvf), bvf=jnp.stack(bvf), wga=jnp.stack(wga),
        w1ab=jnp.concatenate([w1[:node_dim], w1[node_dim:]], axis=1),  # (D, 2H)
        b1=b1,                                           # (1, H)
        w2=w2.T,                                         # (1, H)
        b2=b2.reshape(1),
    )
    raw = dict(node_w=node_w, node_b=node_b, layers=tuple(raw_layers),
               w1=w1, b1=b1, w2=w2, b2=b2)
    return params, raw


# ----------------------------------------------------------------------------
# Pure-JAX reference (unfolded, torch-style math) for correctness checking.
# ----------------------------------------------------------------------------
def reference_forward(raw, node_features, adj, edge_weights):
    hp = jax.lax.Precision.HIGHEST
    h = jnp.dot(node_features, raw["node_w"], precision=hp) + raw["node_b"]
    for (wu, bu, wv, bv, wg, bg) in raw["layers"]:
        u = jnp.dot(h, wu, precision=hp) + bu
        v = jnp.dot(h, wv, precision=hp) + bv
        out = jnp.dot(adj, v, precision=hp)
        gate = jax.nn.sigmoid(
            jnp.dot(jnp.concatenate([u, out], axis=-1), wg, precision=hp) + bg)
        h = jax.nn.relu(h + gate * out)
    N, D = h.shape
    h_i = jnp.broadcast_to(h[:, None, :], (N, N, D))
    h_j = jnp.broadcast_to(h[None, :, :], (N, N, D))
    e = jnp.concatenate([h_i, h_j], axis=-1)
    hid = jax.nn.relu(jnp.dot(e, raw["w1"], precision=hp) + raw["b1"])
    logits = (jnp.dot(hid, raw["w2"], precision=hp) + raw["b2"])[..., 0]
    ew = edge_weights[..., 0]
    loss = jnp.mean((logits * adj - ew) ** 2)
    return logits, loss


# ----------------------------------------------------------------------------
# Forward pass wrappers (single fused pallas_call under jit).
# ----------------------------------------------------------------------------
@jax.jit
def forward_batched(params, node_features, adj_matrix, edge_weights):
    """(B,N,3), (B,N,N), (B,N,N,1) -> logits (B,N,N), per-graph loss (B,)."""
    B, N, _ = node_features.shape
    D = params["node_w"].shape[1]
    L = params["wvf"].shape[0]
    H = params["b1"].shape[1]
    assert N % 8 == 0, "N must be a multiple of 8 (sublane row blocks)"
    RB = 8
    ew = edge_weights[..., 0]                          # (B, N, N) targets

    kernel = functools.partial(_fused_forward_kernel, D, H, L, RB)

    def per_graph(shape):                              # blocked by batch index
        nd = len(shape)
        return pl.BlockSpec((None,) + shape, lambda b, _nd=nd: (b,) + (0,) * _nd)

    def resident(shape):                               # constant index_map
        nd = len(shape)
        return pl.BlockSpec(shape, lambda b, _nd=nd: (0,) * _nd)

    smem = pl.BlockSpec(memory_space=pltpu.MemorySpace.SMEM)

    logits, loss = pl.pallas_call(
        kernel,
        out_shape=(jax.ShapeDtypeStruct((B, N, N), jnp.float32),
                   jax.ShapeDtypeStruct((B, 1, 1), jnp.float32)),
        grid=(B,),
        in_specs=[
            per_graph((N, 3)),                         # node features
            per_graph((N, N)),                         # adjacency
            per_graph((N, N)),                         # edge-weight targets
            resident((3, D)), resident((1, D)),        # node embed W, b
            resident((L, D, 2 * D)), resident((L, 1, 2 * D)),  # [Wv | Wu@Wg_u]
            resident((L, D, D)),                       # Wg_agg
            resident((D, 2 * H)), resident((1, H)),    # [W1a | W1b], b1
            resident((1, H)),                          # W2 row vector
            smem,                                      # b2 scalar
        ],
        out_specs=(per_graph((N, N)), per_graph((1, 1))),
        scratch_shapes=[pltpu.VMEM((N, H), jnp.float32),
                        pltpu.VMEM((N, H), jnp.float32)],
        compiler_params=pltpu.CompilerParams(
            dimension_semantics=("parallel",)),        # shard batch across TCs
    )(node_features, adj_matrix, ew,
      params["node_w"], params["node_b"],
      params["wvf"], params["bvf"], params["wga"],
      params["w1ab"], params["b1"], params["w2"], params["b2"])
    return logits, loss.reshape(B)


@jax.jit
def forward(params, node_features, adj_matrix, edge_weights):
    """Single-graph forward matching the torch module signature/semantics."""
    logits, loss = forward_batched(params, node_features[None],
                                   adj_matrix[None], edge_weights[None])
    return logits[0], loss[0]


if __name__ == "__main__":
    key = jax.random.PRNGKey(0)
    k_param, k_nf, k_adj, k_ew, k_bnf, k_badj, k_bew = jax.random.split(key, 7)

    N = 16          # nodes per graph
    NODE_DIM = 32   # hidden width (module default 128; small for the demo)
    B = 8           # graphs per batched call

    params, raw = init_params(k_param, node_dim=NODE_DIM, edge_dim=NODE_DIM,
                              num_layers=3, cls_hidden=128)

    # --- single-graph path (matches the torch module's forward) -------------
    node_features = jax.random.normal(k_nf, (N, 3), jnp.float32)
    adj_matrix = (jax.random.uniform(k_adj, (N, N)) > 0.5).astype(jnp.float32)
    edge_weights = jax.random.uniform(k_ew, (N, N, 1), jnp.float32)

    logits, loss = forward(params, node_features, adj_matrix, edge_weights)
    logits, loss = jax.block_until_ready((logits, loss))
    assert logits.shape == (N, N) and loss.shape == ()

    ref_logits, ref_loss = reference_forward(raw, node_features,
                                             adj_matrix, edge_weights)
    assert float(jnp.max(jnp.abs(logits - ref_logits))) < 3e-2
    assert float(jnp.abs(loss - ref_loss)) < 2e-2

    # --- batched path: grid over graphs, "parallel" across TensorCores ------
    nf_b = jax.random.normal(k_bnf, (B, N, 3), jnp.float32)
    adj_b = (jax.random.uniform(k_badj, (B, N, N)) > 0.5).astype(jnp.float32)
    ew_b = jax.random.uniform(k_bew, (B, N, N, 1), jnp.float32)
    logits_b, loss_b = forward_batched(params, nf_b, adj_b, ew_b)
    logits_b, loss_b = jax.block_until_ready((logits_b, loss_b))
    assert logits_b.shape == (B, N, N) and loss_b.shape == (B,)

    print("KERNEL_OK")
</pallas_src>

<mosaic_0001>
module attributes {stable_mosaic.version = 11 : i64} {
  func.func @_fused_forward_kernel(%arg0: i32, %arg1: memref<1x16x3xf32, #tpu.memory_space<vmem>>, %arg2: memref<1x16x16xf32, #tpu.memory_space<vmem>>, %arg3: memref<1x16x16xf32, #tpu.memory_space<vmem>>, %arg4: memref<3x32xf32, #tpu.memory_space<vmem>>, %arg5: memref<1x32xf32, #tpu.memory_space<vmem>>, %arg6: memref<3x32x64xf32, #tpu.memory_space<vmem>>, %arg7: memref<3x1x64xf32, #tpu.memory_space<vmem>>, %arg8: memref<3x32x32xf32, #tpu.memory_space<vmem>>, %arg9: memref<32x256xf32, #tpu.memory_space<vmem>>, %arg10: memref<1x128xf32, #tpu.memory_space<vmem>>, %arg11: memref<1x128xf32, #tpu.memory_space<vmem>>, %arg12: memref<1xf32, #tpu.memory_space<smem>>, %arg13: memref<1x16x16xf32, #tpu.memory_space<vmem>>, %arg14: memref<1x1x1xf32, #tpu.memory_space<vmem>>, %arg15: memref<16x128xf32, #tpu.memory_space<vmem>>, %arg16: memref<16x128xf32, #tpu.memory_space<vmem>>) attributes {dimension_semantics = [#tpu.dimension_semantics<parallel>], iteration_bounds = array<i64: 1>, scalar_prefetch = 0 : i64, scratch_operands = 2 : i64, tpu.core_type = #tpu.core_type<tc>, window_params = [{transform_indices = @transform_0, window_bounds = array<i64: 1, 16, 3>}, {transform_indices = @transform_1, window_bounds = array<i64: 1, 16, 16>}, {transform_indices = @transform_2, window_bounds = array<i64: 1, 16, 16>}, {pipeline_mode = #tpu.pipeline_mode<synchronous>, transform_indices = @transform_3, window_bounds = array<i64: 3, 32>}, {pipeline_mode = #tpu.pipeline_mode<synchronous>, transform_indices = @transform_4, window_bounds = array<i64: 1, 32>}, {pipeline_mode = #tpu.pipeline_mode<synchronous>, transform_indices = @transform_5, window_bounds = array<i64: 3, 32, 64>}, {pipeline_mode = #tpu.pipeline_mode<synchronous>, transform_indices = @transform_6, window_bounds = array<i64: 3, 1, 64>}, {pipeline_mode = #tpu.pipeline_mode<synchronous>, transform_indices = @transform_7, window_bounds = array<i64: 3, 32, 32>}, {pipeline_mode = #tpu.pipeline_mode<synchronous>, transform_indices = @transform_8, window_bounds = array<i64: 32, 256>}, {pipeline_mode = #tpu.pipeline_mode<synchronous>, transform_indices = @transform_9, window_bounds = array<i64: 1, 128>}, {pipeline_mode = #tpu.pipeline_mode<synchronous>, transform_indices = @transform_10, window_bounds = array<i64: 1, 128>}, {transform_indices = @transform_11, window_bounds = array<i64: 1>}, {transform_indices = @transform_12, window_bounds = array<i64: 1, 16, 16>}, {transform_indices = @transform_13, window_bounds = array<i64: 1, 1, 1>}]} {
    %c0 = arith.constant 0 : index
    %c0_0 = arith.constant 0 : index
    %c0_1 = arith.constant 0 : index
    %0 = vector.load %arg1[%c0, %c0_0, %c0_1] : memref<1x16x3xf32, #tpu.memory_space<vmem>>, vector<1x16x3xf32>
    %1 = vector.shape_cast %0 : vector<1x16x3xf32> to vector<16x3xf32>
    %c0_2 = arith.constant 0 : index
    %c0_3 = arith.constant 0 : index
    %c0_4 = arith.constant 0 : index
    %2 = vector.load %arg2[%c0_2, %c0_3, %c0_4] : memref<1x16x16xf32, #tpu.memory_space<vmem>>, vector<1x16x16xf32>
    %3 = vector.shape_cast %2 : vector<1x16x16xf32> to vector<16x16xf32>
    %4 = vector.extract_strided_slice %1 {offsets = [0, 0], sizes = [16, 1], strides = [1, 1]} : vector<16x3xf32> to vector<16x1xf32>
    %c0_5 = arith.constant 0 : index
    %c0_6 = arith.constant 0 : index
    %5 = vector.load %arg4[%c0_5, %c0_6] : memref<3x32xf32, #tpu.memory_space<vmem>>, vector<1x32xf32>
    %6 = vector.broadcast %4 : vector<16x1xf32> to vector<16x32xf32>
    %7 = vector.broadcast %5 : vector<1x32xf32> to vector<16x32xf32>
    %8 = arith.mulf %6, %7 : vector<16x32xf32>
    %9 = vector.extract_strided_slice %1 {offsets = [0, 1], sizes = [16, 1], strides = [1, 1]} : vector<16x3xf32> to vector<16x1xf32>
    %c1 = arith.constant 1 : index
    %c0_7 = arith.constant 0 : index
    %10 = vector.load %arg4[%c1, %c0_7] : memref<3x32xf32, #tpu.memory_space<vmem>>, vector<1x32xf32>
    %11 = vector.broadcast %9 : vector<16x1xf32> to vector<16x32xf32>
    %12 = vector.broadcast %10 : vector<1x32xf32> to vector<16x32xf32>
    %13 = arith.mulf %11, %12 : vector<16x32xf32>
    %14 = arith.addf %8, %13 : vector<16x32xf32>
    %15 = vector.extract_strided_slice %1 {offsets = [0, 2], sizes = [16, 1], strides = [1, 1]} : vector<16x3xf32> to vector<16x1xf32>
    %c2 = arith.constant 2 : index
    %c0_8 = arith.constant 0 : index
    %16 = vector.load %arg4[%c2, %c0_8] : memref<3x32xf32, #tpu.memory_space<vmem>>, vector<1x32xf32>
    %17 = vector.broadcast %15 : vector<16x1xf32> to vector<16x32xf32>
    %18 = vector.broadcast %16 : vector<1x32xf32> to vector<16x32xf32>
    %19 = arith.mulf %17, %18 : vector<16x32xf32>
    %20 = arith.addf %14, %19 : vector<16x32xf32>
    %c0_9 = arith.constant 0 : index
    %c0_10 = arith.constant 0 : index
    %21 = vector.load %arg5[%c0_9, %c0_10] : memref<1x32xf32, #tpu.memory_space<vmem>>, vector<1x32xf32>
    %22 = vector.broadcast %21 : vector<1x32xf32> to vector<16x32xf32>
    %23 = arith.addf %20, %22 : vector<16x32xf32>
    %c0_11 = arith.constant 0 : index
    %c0_12 = arith.constant 0 : index
    %c0_13 = arith.constant 0 : index
    %24 = vector.load %arg6[%c0_11, %c0_12, %c0_13] : memref<3x32x64xf32, #tpu.memory_space<vmem>>, vector<1x32x64xf32>
    %25 = vector.shape_cast %24 : vector<1x32x64xf32> to vector<32x64xf32>
    %cst = arith.constant dense<0.000000e+00> : vector<16x64xf32>
    %26 = tpu.matmul %23, %25, %cst {dimension_numbers = #tpu.dot_dimension_numbers<[1], [0], [0], [1], [0, 0, 1, 1], [], []>} : vector<16x32xf32>, vector<32x64xf32>, vector<16x64xf32> -> vector<16x64xf32>
    %c0_14 = arith.constant 0 : index
    %c0_15 = arith.constant 0 : index
    %c0_16 = arith.constant 0 : index
    %27 = vector.load %arg7[%c0_14, %c0_15, %c0_16] : memref<3x1x64xf32, #tpu.memory_space<vmem>>, vector<1x1x64xf32>
    %28 = vector.shape_cast %27 : vector<1x1x64xf32> to vector<1x64xf32>
    %29 = vector.broadcast %28 : vector<1x64xf32> to vector<16x64xf32>
    %30 = arith.addf %26, %29 : vector<16x64xf32>
    %31 = vector.extract_strided_slice %30 {offsets = [0, 0], sizes = [16, 32], strides = [1, 1]} : vector<16x64xf32> to vector<16x32xf32>
    %32 = vector.extract_strided_slice %30 {offsets = [0, 32], sizes = [16, 32], strides = [1, 1]} : vector<16x64xf32> to vector<16x32xf32>
    %cst_17 = arith.constant dense<0.000000e+00> : vector<16x32xf32>
    %33 = tpu.matmul %3, %31, %cst_17 {dimension_numbers = #tpu.dot_dimension_numbers<[1], [0], [0], [1], [0, 0, 1, 1], [], []>} : vector<16x16xf32>, vector<16x32xf32>, vector<16x32xf32> -> vector<16x32xf32>
    %c0_18 = arith.constant 0 : index
    %c0_19 = arith.constant 0 : index
    %c0_20 = arith.constant 0 : index
    %34 = vector.load %arg8[%c0_18, %c0_19, %c0_20] : memref<3x32x32xf32, #tpu.memory_space<vmem>>, vector<1x32x32xf32>
    %35 = vector.shape_cast %34 : vector<1x32x32xf32> to vector<32x32xf32>
    %cst_21 = arith.constant dense<0.000000e+00> : vector<16x32xf32>
    %36 = tpu.matmul %33, %35, %cst_21 {dimension_numbers = #tpu.dot_dimension_numbers<[1], [0], [0], [1], [0, 0, 1, 1], [], []>} : vector<16x32xf32>, vector<32x32xf32>, vector<16x32xf32> -> vector<16x32xf32>
    %37 = arith.addf %32, %36 : vector<16x32xf32>
    %38 = arith.negf %37 : vector<16x32xf32>
    %39 = math.exp %38 : vector<16x32xf32>
    %cst_22 = arith.constant 1.000000e+00 : f32
    %40 = vector.broadcast %cst_22 : f32 to vector<16x32xf32>
    %41 = arith.addf %40, %39 : vector<16x32xf32>
    %42 = arith.divf %40, %41 : vector<16x32xf32>
    %43 = arith.mulf %42, %33 : vector<16x32xf32>
    %44 = arith.addf %23, %43 : vector<16x32xf32>
    %cst_23 = arith.constant 0.000000e+00 : f32
    %45 = vector.broadcast %cst_23 : f32 to vector<16x32xf32>
    %46 = arith.maximumf %44, %45 : vector<16x32xf32>
    %c1_24 = arith.constant 1 : index
    %c0_25 = arith.constant 0 : index
    %c0_26 = arith.constant 0 : index
    %47 = vector.load %arg6[%c1_24, %c0_25, %c0_26] : memref<3x32x64xf32, #tpu.memory_space<vmem>>, vector<1x32x64xf32>
    %48 = vector.shape_cast %47 : vector<1x32x64xf32> to vector<32x64xf32>
    %cst_27 = arith.constant dense<0.000000e+00> : vector<16x64xf32>
    %49 = tpu.matmul %46, %48, %cst_27 {dimension_numbers = #tpu.dot_dimension_numbers<[1], [0], [0], [1], [0, 0, 1, 1], [], []>} : vector<16x32xf32>, vector<32x64xf32>, vector<16x64xf32> -> vector<16x64xf32>
    %c1_28 = arith.constant 1 : index
    %c0_29 = arith.constant 0 : index
    %c0_30 = arith.constant 0 : index
    %50 = vector.load %arg7[%c1_28, %c0_29, %c0_30] : memref<3x1x64xf32, #tpu.memory_space<vmem>>, vector<1x1x64xf32>
    %51 = vector.shape_cast %50 : vector<1x1x64xf32> to vector<1x64xf32>
    %52 = vector.broadcast %51 : vector<1x64xf32> to vector<16x64xf32>
    %53 = arith.addf %49, %52 : vector<16x64xf32>
    %54 = vector.extract_strided_slice %53 {offsets = [0, 0], sizes = [16, 32], strides = [1, 1]} : vector<16x64xf32> to vector<16x32xf32>
    %55 = vector.extract_strided_slice %53 {offsets = [0, 32], sizes = [16, 32], strides = [1, 1]} : vector<16x64xf32> to vector<16x32xf32>
    %cst_31 = arith.constant dense<0.000000e+00> : vector<16x32xf32>
    %56 = tpu.matmul %3, %54, %cst_31 {dimension_numbers = #tpu.dot_dimension_numbers<[1], [0], [0], [1], [0, 0, 1, 1], [], []>} : vector<16x16xf32>, vector<16x32xf32>, vector<16x32xf32> -> vector<16x32xf32>
    %c1_32 = arith.constant 1 : index
    %c0_33 = arith.constant 0 : index
    %c0_34 = arith.constant 0 : index
    %57 = vector.load %arg8[%c1_32, %c0_33, %c0_34] : memref<3x32x32xf32, #tpu.memory_space<vmem>>, vector<1x32x32xf32>
    %58 = vector.shape_cast %57 : vector<1x32x32xf32> to vector<32x32xf32>
    %cst_35 = arith.constant dense<0.000000e+00> : vector<16x32xf32>
    %59 = tpu.matmul %56, %58, %cst_35 {dimension_numbers = #tpu.dot_dimension_numbers<[1], [0], [0], [1], [0, 0, 1, 1], [], []>} : vector<16x32xf32>, vector<32x32xf32>, vector<16x32xf32> -> vector<16x32xf32>
    %60 = arith.addf %55, %59 : vector<16x32xf32>
    %61 = arith.negf %60 : vector<16x32xf32>
    %62 = math.exp %61 : vector<16x32xf32>
    %cst_36 = arith.constant 1.000000e+00 : f32
    %63 = vector.broadcast %cst_36 : f32 to vector<16x32xf32>
    %64 = arith.addf %63, %62 : vector<16x32xf32>
    %65 = arith.divf %63, %64 : vector<16x32xf32>
    %66 = arith.mulf %65, %56 : vector<16x32xf32>
    %67 = arith.addf %46, %66 : vector<16x32xf32>
    %cst_37 = arith.constant 0.000000e+00 : f32
    %68 = vector.broadcast %cst_37 : f32 to vector<16x32xf32>
    %69 = arith.maximumf %67, %68 : vector<16x32xf32>
    %c2_38 = arith.constant 2 : index
    %c0_39 = arith.constant 0 : index
    %c0_40 = arith.constant 0 : index
    %70 = vector.load %arg6[%c2_38, %c0_39, %c0_40] : memref<3x32x64xf32, #tpu.memory_space<vmem>>, vector<1x32x64xf32>
    %71 = vector.shape_cast %70 : vector<1x32x64xf32> to vector<32x64xf32>
    %cst_41 = arith.constant dense<0.000000e+00> : vector<16x64xf32>
    %72 = tpu.matmul %69, %71, %cst_41 {dimension_numbers = #tpu.dot_dimension_numbers<[1], [0], [0], [1], [0, 0, 1, 1], [], []>} : vector<16x32xf32>, vector<32x64xf32>, vector<16x64xf32> -> vector<16x64xf32>
    %c2_42 = arith.constant 2 : index
    %c0_43 = arith.constant 0 : index
    %c0_44 = arith.constant 0 : index
    %73 = vector.load %arg7[%c2_42, %c0_43, %c0_44] : memref<3x1x64xf32, #tpu.memory_space<vmem>>, vector<1x1x64xf32>
    %74 = vector.shape_cast %73 : vector<1x1x64xf32> to vector<1x64xf32>
    %75 = vector.broadcast %74 : vector<1x64xf32> to vector<16x64xf32>
    %76 = arith.addf %72, %75 : vector<16x64xf32>
    %77 = vector.extract_strided_slice %76 {offsets = [0, 0], sizes = [16, 32], strides = [1, 1]} : vector<16x64xf32> to vector<16x32xf32>
    %78 = vector.extract_strided_slice %76 {offsets = [0, 32], sizes = [16, 32], strides = [1, 1]} : vector<16x64xf32> to vector<16x32xf32>
    %cst_45 = arith.constant dense<0.000000e+00> : vector<16x32xf32>
    %79 = tpu.matmul %3, %77, %cst_45 {dimension_numbers = #tpu.dot_dimension_numbers<[1], [0], [0], [1], [0, 0, 1, 1], [], []>} : vector<16x16xf32>, vector<16x32xf32>, vector<16x32xf32> -> vector<16x32xf32>
    %c2_46 = arith.constant 2 : index
    %c0_47 = arith.constant 0 : index
    %c0_48 = arith.constant 0 : index
    %80 = vector.load %arg8[%c2_46, %c0_47, %c0_48] : memref<3x32x32xf32, #tpu.memory_space<vmem>>, vector<1x32x32xf32>
    %81 = vector.shape_cast %80 : vector<1x32x32xf32> to vector<32x32xf32>
    %cst_49 = arith.constant dense<0.000000e+00> : vector<16x32xf32>
    %82 = tpu.matmul %79, %81, %cst_49 {dimension_numbers = #tpu.dot_dimension_numbers<[1], [0], [0], [1], [0, 0, 1, 1], [], []>} : vector<16x32xf32>, vector<32x32xf32>, vector<16x32xf32> -> vector<16x32xf32>
    %83 = arith.addf %78, %82 : vector<16x32xf32>
    %84 = arith.negf %83 : vector<16x32xf32>
    %85 = math.exp %84 : vector<16x32xf32>
    %cst_50 = arith.constant 1.000000e+00 : f32
    %86 = vector.broadcast %cst_50 : f32 to vector<16x32xf32>
    %87 = arith.addf %86, %85 : vector<16x32xf32>
    %88 = arith.divf %86, %87 : vector<16x32xf32>
    %89 = arith.mulf %88, %79 : vector<16x32xf32>
    %90 = arith.addf %69, %89 : vector<16x32xf32>
    %cst_51 = arith.constant 0.000000e+00 : f32
    %91 = vector.broadcast %cst_51 : f32 to vector<16x32xf32>
    %92 = arith.maximumf %90, %91 : vector<16x32xf32>
    %c0_52 = arith.constant 0 : index
    %c0_53 = arith.constant 0 : index
    %93 = vector.load %arg9[%c0_52, %c0_53] : memref<32x256xf32, #tpu.memory_space<vmem>>, vector<32x256xf32>
    %cst_54 = arith.constant dense<0.000000e+00> : vector<16x256xf32>
    %94 = tpu.matmul %92, %93, %cst_54 {dimension_numbers = #tpu.dot_dimension_numbers<[1], [0], [0], [1], [0, 0, 1, 1], [], []>} : vector<16x32xf32>, vector<32x256xf32>, vector<16x256xf32> -> vector<16x256xf32>
    %95 = vector.extract_strided_slice %94 {offsets = [0, 0], sizes = [16, 128], strides = [1, 1]} : vector<16x256xf32> to vector<16x128xf32>
    %c0_55 = arith.constant 0 : index
    %c0_56 = arith.constant 0 : index
    %96 = vector.load %arg10[%c0_55, %c0_56] : memref<1x128xf32, #tpu.memory_space<vmem>>, vector<1x128xf32>
    %97 = vector.broadcast %96 : vector<1x128xf32> to vector<16x128xf32>
    %98 = arith.addf %95, %97 : vector<16x128xf32>
    %c0_57 = arith.constant 0 : index
    %c0_58 = arith.constant 0 : index
    %99 = vector.load %arg15[%c0_57, %c0_58] : memref<16x128xf32, #tpu.memory_space<vmem>>, vector<16x128xf32>
    tpu.vector_store %arg15[%c0_57, %c0_58], %98 {strides = array<i32>} : memref<16x128xf32, #tpu.memory_space<vmem>>, vector<16x128xf32>,
    %100 = vector.extract_strided_slice %94 {offsets = [0, 128], sizes = [16, 128], strides = [1, 1]} : vector<16x256xf32> to vector<16x128xf32>
    %c0_59 = arith.constant 0 : index
    %c0_60 = arith.constant 0 : index
    %101 = vector.load %arg16[%c0_59, %c0_60] : memref<16x128xf32, #tpu.memory_space<vmem>>, vector<16x128xf32>
    tpu.vector_store %arg16[%c0_59, %c0_60], %100 {strides = array<i32>} : memref<16x128xf32, #tpu.memory_space<vmem>>, vector<16x128xf32>,
    %c0_61 = arith.constant 0 : index
    %c0_62 = arith.constant 0 : index
    %102 = vector.load %arg16[%c0_61, %c0_62] : memref<16x128xf32, #tpu.memory_space<vmem>>, vector<16x128xf32>
    %c0_63 = arith.constant 0 : index
    %c0_64 = arith.constant 0 : index
    %103 = vector.load %arg11[%c0_63, %c0_64] : memref<1x128xf32, #tpu.memory_space<vmem>>, vector<1x128xf32>
    %c0_65 = arith.constant 0 : index
    %104 = memref.load %arg12[%c0_65] : memref<1xf32, #tpu.memory_space<smem>>
    %cst_66 = arith.constant 0.000000e+00 : f32
    %105 = vector.broadcast %cst_66 : f32 to vector<1x1xf32>
    %c0_i32 = arith.constant 0 : i32
    %c2_i32 = arith.constant 2 : i32
    %106 = arith.addi %c0_i32, %c2_i32 : i32
    %c1_i32 = arith.constant 1 : i32
    %107 = scf.for %arg17 = %c0_i32 to %106 step %c1_i32 iter_args(%arg18 = %105) -> (vector<1x1xf32>)  : i32 {
      %c8_i32 = arith.constant 8 : i32
      %113 = arith.muli %arg17, %c8_i32 : i32
      %114 = tpu.assume_multiple %113, 8 : i32
      %115 = arith.index_cast %114 : i32 to index
      %c0_72 = arith.constant 0 : index
      %116 = vector.load %arg15[%115, %c0_72] : memref<16x128xf32, #tpu.memory_space<vmem>>, vector<8x128xf32>
      %117 = vector.shape_cast %116 : vector<8x128xf32> to vector<8x1x128xf32>
      %118 = vector.shape_cast %102 : vector<16x128xf32> to vector<1x16x128xf32>
      %119 = vector.broadcast %117 : vector<8x1x128xf32> to vector<8x16x128xf32>
      %120 = vector.broadcast %118 : vector<1x16x128xf32> to vector<8x16x128xf32>
      %121 = arith.addf %119, %120 : vector<8x16x128xf32>
      %cst_73 = arith.constant 0.000000e+00 : f32
      %122 = vector.broadcast %cst_73 : f32 to vector<8x16x128xf32>
      %123 = arith.maximumf %121, %122 : vector<8x16x128xf32>
      %124 = vector.shape_cast %103 : vector<1x128xf32> to vector<1x1x128xf32>
      %125 = vector.broadcast %124 : vector<1x1x128xf32> to vector<8x16x128xf32>
      %126 = arith.mulf %123, %125 : vector<8x16x128xf32>
      %cst_74 = arith.constant dense<0.000000e+00> : vector<8x16xf32>
      %127 = vector.multi_reduction <add>, %126, %cst_74 [2] : vector<8x16x128xf32> to vector<8x16xf32>
      %128 = vector.broadcast %104 : f32 to vector<8x16xf32>
      %129 = arith.addf %127, %128 : vector<8x16xf32>
      %c0_75 = arith.constant 0 : index
      %130 = arith.index_cast %114 : i32 to index
      %c0_76 = arith.constant 0 : index
      %131 = vector.load %arg13[%c0_75, %130, %c0_76] : memref<1x16x16xf32, #tpu.memory_space<vmem>>, vector<1x8x16xf32>
      %132 = vector.shape_cast %131 : vector<1x8x16xf32> to vector<8x16xf32>
      %133 = vector.shape_cast %129 : vector<8x16xf32> to vector<1x8x16xf32>
      tpu.vector_store %arg13[%c0_75, %130, %c0_76], %133 {strides = array<i32>} : memref<1x16x16xf32, #tpu.memory_space<vmem>>, vector<1x8x16xf32>,
      %c0_77 = arith.constant 0 : index
      %134 = arith.index_cast %114 : i32 to index
      %c0_78 = arith.constant 0 : index
      %135 = vector.load %arg2[%c0_77, %134, %c0_78] : memref<1x16x16xf32, #tpu.memory_space<vmem>>, vector<1x8x16xf32>
      %136 = vector.shape_cast %135 : vector<1x8x16xf32> to vector<8x16xf32>
      %137 = arith.mulf %129, %136 : vector<8x16xf32>
      %c0_79 = arith.constant 0 : index
      %138 = arith.index_cast %114 : i32 to index
      %c0_80 = arith.constant 0 : index
      %139 = vector.load %arg3[%c0_79, %138, %c0_80] : memref<1x16x16xf32, #tpu.memory_space<vmem>>, vector<1x8x16xf32>
      %140 = vector.shape_cast %139 : vector<1x8x16xf32> to vector<8x16xf32>
      %141 = arith.subf %137, %140 : vector<8x16xf32>
      %142 = arith.mulf %141, %141 : vector<8x16xf32>
      %143 = vector.shape_cast %142 : vector<8x16xf32> to vector<1x8x16xf32>
      %cst_81 = arith.constant dense<0.000000e+00> : vector<1xf32>
      %144 = vector.multi_reduction <add>, %143, %cst_81 [1, 2] : vector<1x8x16xf32> to vector<1xf32>
      %145 = vector.shape_cast %144 : vector<1xf32> to vector<1x1x1xf32>
      %146 = vector.extract %145[0, 0, 0] : f32 from vector<1x1x1xf32>
      %147 = vector.broadcast %146 : f32 to vector<1x1xf32>
      %148 = arith.addf %arg18, %147 : vector<1x1xf32>
      scf.yield %148 : vector<1x1xf32>
    }
    %c2_i32_67 = arith.constant 2 : i32
    %cst_68 = arith.constant 3.906250e-03 : f32
    %108 = vector.broadcast %cst_68 : f32 to vector<1x1xf32>
    %109 = arith.mulf %107, %108 : vector<1x1xf32>
    %c0_69 = arith.constant 0 : index
    %c0_70 = arith.constant 0 : index
    %c0_71 = arith.constant 0 : index
    %110 = vector.load %arg14[%c0_69, %c0_70, %c0_71] : memref<1x1x1xf32, #tpu.memory_space<vmem>>, vector<1x1x1xf32>
    %111 = vector.shape_cast %110 : vector<1x1x1xf32> to vector<1x1xf32>
    %112 = vector.shape_cast %109 : vector<1x1xf32> to vector<1x1x1xf32>
    tpu.vector_store %arg14[%c0_69, %c0_70, %c0_71], %112 {strides = array<i32>} : memref<1x1x1xf32, #tpu.memory_space<vmem>>, vector<1x1x1xf32>,
    return
  }
  func.func @transform_0(%arg0: i32) -> (i32, i32, i32) {
    %c0_i32 = arith.constant 0 : i32
    %c0_i32_0 = arith.constant 0 : i32
    %c0_i32_1 = arith.constant 0 : i32
    return %arg0, %c0_i32, %c0_i32_0 : i32, i32, i32
  }
  func.func @transform_1(%arg0: i32) -> (i32, i32, i32) {
    %c0_i32 = arith.constant 0 : i32
    %c0_i32_0 = arith.constant 0 : i32
    %c0_i32_1 = arith.constant 0 : i32
    return %arg0, %c0_i32, %c0_i32_0 : i32, i32, i32
  }
  func.func @transform_2(%arg0: i32) -> (i32, i32, i32) {
    %c0_i32 = arith.constant 0 : i32
    %c0_i32_0 = arith.constant 0 : i32
    %c0_i32_1 = arith.constant 0 : i32
    return %arg0, %c0_i32, %c0_i32_0 : i32, i32, i32
  }
  func.func @transform_3(%arg0: i32) -> (i32, i32) {
    %c0_i32 = arith.constant 0 : i32
    %c0_i32_0 = arith.constant 0 : i32
    %c0_i32_1 = arith.constant 0 : i32
    return %c0_i32, %c0_i32_0 : i32, i32
  }
  func.func @transform_4(%arg0: i32) -> (i32, i32) {
    %c0_i32 = arith.constant 0 : i32
    %c0_i32_0 = arith.constant 0 : i32
    %c0_i32_1 = arith.constant 0 : i32
    return %c0_i32, %c0_i32_0 : i32, i32
  }
  func.func @transform_5(%arg0: i32) -> (i32, i32, i32) {
    %c0_i32 = arith.constant 0 : i32
    %c0_i32_0 = arith.constant 0 : i32
    %c0_i32_1 = arith.constant 0 : i32
    %c0_i32_2 = arith.constant 0 : i32
    return %c0_i32, %c0_i32_0, %c0_i32_1 : i32, i32, i32
  }
  func.func @transform_6(%arg0: i32) -> (i32, i32, i32) {
    %c0_i32 = arith.constant 0 : i32
    %c0_i32_0 = arith.constant 0 : i32
    %c0_i32_1 = arith.constant 0 : i32
    %c0_i32_2 = arith.constant 0 : i32
    return %c0_i32, %c0_i32_0, %c0_i32_1 : i32, i32, i32
  }
  func.func @transform_7(%arg0: i32) -> (i32, i32, i32) {
    %c0_i32 = arith.constant 0 : i32
    %c0_i32_0 = arith.constant 0 : i32
    %c0_i32_1 = arith.constant 0 : i32
    %c0_i32_2 = arith.constant 0 : i32
    return %c0_i32, %c0_i32_0, %c0_i32_1 : i32, i32, i32
  }
  func.func @transform_8(%arg0: i32) -> (i32, i32) {
    %c0_i32 = arith.constant 0 : i32
    %c0_i32_0 = arith.constant 0 : i32
    %c0_i32_1 = arith.constant 0 : i32
    return %c0_i32, %c0_i32_0 : i32, i32
  }
  func.func @transform_9(%arg0: i32) -> (i32, i32) {
    %c0_i32 = arith.constant 0 : i32
    %c0_i32_0 = arith.constant 0 : i32
    %c0_i32_1 = arith.constant 0 : i32
    return %c0_i32, %c0_i32_0 : i32, i32
  }
  func.func @transform_10(%arg0: i32) -> (i32, i32) {
    %c0_i32 = arith.constant 0 : i32
    %c0_i32_0 = arith.constant 0 : i32
    %c0_i32_1 = arith.constant 0 : i32
    return %c0_i32, %c0_i32_0 : i32, i32
  }
  func.func @transform_11(%arg0: i32) -> i32 {
    %c0_i32 = arith.constant 0 : i32
    %c0_i32_0 = arith.constant 0 : i32
    return %c0_i32 : i32
  }
  func.func @transform_12(%arg0: i32) -> (i32, i32, i32) {
    %c0_i32 = arith.constant 0 : i32
    %c0_i32_0 = arith.constant 0 : i32
    %c0_i32_1 = arith.constant 0 : i32
    return %arg0, %c0_i32, %c0_i32_0 : i32, i32, i32
  }
  func.func @transform_13(%arg0: i32) -> (i32, i32, i32) {
    %c0_i32 = arith.constant 0 : i32
    %c0_i32_0 = arith.constant 0 : i32
    %c0_i32_1 = arith.constant 0 : i32
    return %arg0, %c0_i32, %c0_i32_0 : i32, i32, i32
  }
}

</mosaic_0001>

<llo_original>
// kernel: forward_batched.1
$region0: #{forward_batched.1}
  #allocation0 [shape = 'u32[]', space=smem, size = 0x4, offset = 0x4, fixed_abs, tag = 'smem constant byte address 0x4 - core index']
  #allocation1 [shape = 'u32[144,128]{1,0:T(1,128)}', space=vmem, size = 0x12000, scoped, tag = 'internal scratch']
  #allocation2 [shape = 'f32[16,128]{1,0:T(8,128)}', space=vmem, size = 0x2000, scoped, tag = 'scratch operand']
  #allocation3 [shape = 'f32[16,128]{1,0:T(8,128)}', space=vmem, size = 0x2000, scoped, tag = 'scratch operand']
  #allocation4 [shape = 'f32[1]{0:T(128)S(6)}', space=smem, size = 0x200, scoped, tag = 'scoped memory for forward_batched.1']
  %s0 = inlined_call_operand.vmem [shape: f32[1,16,3], index: 0, kind: input, shape index: {}]
  %s1 = inlined_call_operand.vmem [shape: f32[1,16,16], index: 1, kind: input, shape index: {}]
  %s2 = inlined_call_operand.vmem [shape: f32[1,16,16], index: 2, kind: input, shape index: {}]
  %s3 = inlined_call_operand.hbm [shape: f32[3,32], index: 3, kind: input, shape index: {}]
  %s4 = inlined_call_operand.hbm [shape: f32[1,32], index: 4, kind: input, shape index: {}]
  %s5 = inlined_call_operand.hbm [shape: f32[3,32,64], index: 5, kind: input, shape index: {}]
  %s6 = inlined_call_operand.hbm [shape: f32[3,1,64], index: 6, kind: input, shape index: {}]
  %s7 = inlined_call_operand.hbm [shape: f32[3,32,32], index: 7, kind: input, shape index: {}]
  %s8 = inlined_call_operand.hbm [shape: f32[32,256], index: 8, kind: input, shape index: {}]
  %s9 = inlined_call_operand.hbm [shape: f32[1,128], index: 9, kind: input, shape index: {}]
  %s10 = inlined_call_operand.hbm [shape: f32[1,128], index: 10, kind: input, shape index: {}]
  %s11 = inlined_call_operand.<no memory space> [shape: f32[1], index: 11, kind: input, shape index: {}]
  %s12 = inlined_call_operand.hbm [shape: f32[1,16,16], index: 12, kind: output, shape index: {0}]
  %s13 = inlined_call_operand.hbm [shape: f32[1,1,1], index: 13, kind: output, shape index: {1}]
  %14 = xla_tuple %s12, %s13
  %s15 = sld [smem:[#allocation0]]
  $region105: #{forward_batched.1} parent=0
    _
  %s17 = ssub.s32 1, %s15
  %s18 = scalar_select 0, %s17, %s15
  %19 = sst [smem:[#allocation4]] %s11
  $region1: #{forward_batched.1} parent=0
    #allocation5 [shape = 'u8[2048]{0}', space=vmem, size = 0x800, scoped, tag = 'input window, operand 3, single buffered']
    #allocation6 [shape = 's32[1]{0}', space=sflag, size = 0x4, scoped, tag = 'scoped memory for forward_batched.1']
    #allocation7 [shape = 's32[1]{0}', space=sflag, size = 0x4, scoped, tag = 'scoped memory for forward_batched.1']
    #allocation8 [shape = 'u8[512]{0}', space=vmem, size = 0x400, scoped, tag = 'input window, operand 4, single buffered']
    #allocation9 [shape = 's32[1]{0}', space=sflag, size = 0x4, scoped, tag = 'scoped memory for forward_batched.1']
    #allocation10 [shape = 'u8[49152]{0}', space=vmem, size = 0xc000, scoped, tag = 'input window, operand 5, single buffered']
    #allocation11 [shape = 'u8[1536]{0}', space=vmem, size = 0x800, scoped, tag = 'input window, operand 6, single buffered']
    #allocation12 [shape = 's32[1]{0}', space=sflag, size = 0x4, scoped, tag = 'scoped memory for forward_batched.1']
    #allocation13 [shape = 'u8[49152]{0}', space=vmem, size = 0xc000, scoped, tag = 'input window, operand 7, single buffered']
    #allocation14 [shape = 'u8[32768]{0}', space=vmem, size = 0x8000, scoped, tag = 'input window, operand 8, single buffered']
    #allocation15 [shape = 's32[1]{0}', space=sflag, size = 0x4, scoped, tag = 'scoped memory for forward_batched.1']
    #allocation16 [shape = 'u8[512]{0}', space=vmem, size = 0x400, scoped, tag = 'input window, operand 9, single buffered']
    #allocation17 [shape = 'u8[512]{0}', space=vmem, size = 0x400, scoped, tag = 'input window, operand 10, single buffered']
    #allocation18 [shape = 's32[1]{0}', space=sflag, size = 0x4, scoped, tag = 'scoped memory for forward_batched.1']
    #allocation19 [shape = 'u8[8192]{0}', space=vmem, size = 0x2000, scoped, tag = 'output window, operand 0, single buffered']
    #allocation20 [shape = 'u8[512]{0}', space=vmem, size = 0x400, scoped, tag = 'output window, operand 1, single buffered']
    #allocation21 [shape = 's32[1]{0}', space=sflag, size = 0x4, scoped, tag = 'scoped memory for forward_batched.1']
    %20 = vsyncpa [#allocation6], 0
    %21 = vsyncpa [#allocation9], 0
    %22 = vsyncpa [#allocation12], 0
    %23 = vsyncpa [#allocation15], 0
    %24 = vsyncpa [#allocation18], 0
    %25 = vsyncpa [#allocation7], 0
    %26 = vsyncpa [#allocation21], 0
    // Predicated region
    $region2: #{forward_batched.1} parent=1 // pred_check
      _
    $region3: #{forward_batched.1} parent=1 // pred_check_branch
      %28 = sbr.rel (0) target = $region5
    $region4: #{forward_batched.1} parent=1 // pred_region
      _
    $region5: #{forward_batched.1} parent=1 // pred_fallthru
      _
    // Predicated region
    $region6: #{forward_batched.1} parent=1 // pred_check
      _
    $region7: #{forward_batched.1} parent=1 // pred_check_branch
      %30 = sbr.rel (0) target = $region9
    $region8: #{forward_batched.1} parent=1 // pred_region
      _
    $region9: #{forward_batched.1} parent=1 // pred_fallthru
      _
    // Predicated region
    $region10: #{forward_batched.1} parent=1 // pred_check
      _
    $region11: #{forward_batched.1} parent=1 // pred_check_branch
      %32 = sbr.rel (0) target = $region13
    $region12: #{forward_batched.1} parent=1 // pred_region
      _
    $region13: #{forward_batched.1} parent=1 // pred_fallthru
      _
    // Predicated region
    $region14: #{forward_batched.1} parent=1 // pred_check
      _
    $region15: #{forward_batched.1} parent=1 // pred_check_branch
      %34 = sbr.rel (0) target = $region17
    $region16: #{forward_batched.1} parent=1 // pred_region
      %s36 = ssub.s32 64, 64
      %37 = vsyncadd [#allocation6], %s36
      %s39 = sshll.u32 [#allocation5], 4
      %s40 = int_to_ptr.vmem [resolvable:$true] %s39
      %42 = dma.hbm_to_vmem [thread:$0]  %s3, 64, %s40, [#allocation6]
    $region17: #{forward_batched.1} parent=1 // pred_fallthru
      _
    // Predicated region
    $region18: #{forward_batched.1} parent=1 // pred_check
      _
    $region19: #{forward_batched.1} parent=1 // pred_check_branch
      %44 = sbr.rel (0) target = $region21
    $region20: #{forward_batched.1} parent=1 // pred_region
      %s46 = ssub.s32 16, 16
      %47 = vsyncadd [#allocation9], %s46
      %s49 = sshll.u32 [#allocation8], 4
      %s50 = int_to_ptr.vmem [resolvable:$true] %s49
      %52 = dma.hbm_to_vmem [thread:$0]  %s4, 16, %s50, [#allocation9]
    $region21: #{forward_batched.1} parent=1 // pred_fallthru
      _
    // Predicated region
    $region22: #{forward_batched.1} parent=1 // pred_check
      _
    $region23: #{forward_batched.1} parent=1 // pred_check_branch
      %54 = sbr.rel (0) target = $region25
    $region24: #{forward_batched.1} parent=1 // pred_region
      %s56 = ssub.s32 1536, 1536
      %57 = vsyncadd [#allocation9], %s56
      %s58 = sshll.u32 [#allocation10], 4
      %s59 = int_to_ptr.vmem [resolvable:$true] %s58
      %64 = dma.hbm_to_vmem [thread:$0]  %s5, 1536, %s59, [#allocation9], 128, 128, 8
    $region25: #{forward_batched.1} parent=1 // pred_fallthru
      _
    // Predicated region
    $region26: #{forward_batched.1} parent=1 // pred_check
      _
    $region27: #{forward_batched.1} parent=1 // pred_check_branch
      %66 = sbr.rel (0) target = $region29
    $region28: #{forward_batched.1} parent=1 // pred_region
      %s68 = ssub.s32 48, 48
      %69 = vsyncadd [#allocation12], %s68
      %s70 = sshll.u32 [#allocation11], 4
      %s71 = int_to_ptr.vmem [resolvable:$true] %s70
      %76 = dma.hbm_to_vmem [thread:$0]  %s6, 48, %s71, [#allocation12], 16, 16, 1
    $region29: #{forward_batched.1} parent=1 // pred_fallthru
      _
    // Predicated region
    $region30: #{forward_batched.1} parent=1 // pred_check
      _
    $region31: #{forward_batched.1} parent=1 // pred_check_branch
      %78 = sbr.rel (0) target = $region33
    $region32: #{forward_batched.1} parent=1 // pred_region
      %s80 = ssub.s32 1536, 1536
      %81 = vsyncadd [#allocation12], %s80
      %s82 = sshll.u32 [#allocation13], 4
      %s83 = int_to_ptr.vmem [resolvable:$true] %s82
      %88 = dma.hbm_to_vmem [thread:$0]  %s7, 1536, %s83, [#allocation12], 128, 128, 8
    $region33: #{forward_batched.1} parent=1 // pred_fallthru
      _
    // Predicated region
    $region34: #{forward_batched.1} parent=1 // pred_check
      _
    $region35: #{forward_batched.1} parent=1 // pred_check_branch
      %90 = sbr.rel (0) target = $region37
    $region36: #{forward_batched.1} parent=1 // pred_region
      %s92 = ssub.s32 1024, 1024
      %93 = vsyncadd [#allocation15], %s92
      %s94 = sshll.u32 [#allocation14], 4
      %s95 = int_to_ptr.vmem [resolvable:$true] %s94
      %100 = dma.hbm_to_vmem [thread:$0]  %s8, 1024, %s95, [#allocation15], 256, 256, 16
    $region37: #{forward_batched.1} parent=1 // pred_fallthru
      _
    // Predicated region
    $region38: #{forward_batched.1} parent=1 // pred_check
      _
    $region39: #{forward_batched.1} parent=1 // pred_check_branch
      %102 = sbr.rel (0) target = $region41
    $region40: #{forward_batched.1} parent=1 // pred_region
      %s104 = ssub.s32 16, 16
      %105 = vsyncadd [#allocation15], %s104
      %s107 = sshll.u32 [#allocation16], 4
      %s108 = int_to_ptr.vmem [resolvable:$true] %s107
      %110 = dma.hbm_to_vmem [thread:$0]  %s9, 16, %s108, [#allocation15]
    $region41: #{forward_batched.1} parent=1 // pred_fallthru
      _
    // Predicated region
    $region42: #{forward_batched.1} parent=1 // pred_check
      _
    $region43: #{forward_batched.1} parent=1 // pred_check_branch
      %112 = sbr.rel (0) target = $region45
    $region44: #{forward_batched.1} parent=1 // pred_region
      %s114 = ssub.s32 16, 16
      %115 = vsyncadd [#allocation18], %s114
      %s117 = sshll.u32 [#allocation17], 4
      %s118 = int_to_ptr.vmem [resolvable:$true] %s117
      %120 = dma.hbm_to_vmem [thread:$0]  %s10, 16, %s118, [#allocation18]
    $region45: #{forward_batched.1} parent=1 // pred_fallthru
      _
    // Predicated region
    $region46: #{forward_batched.1} parent=1 // pred_check
      _
    $region47: #{forward_batched.1} parent=1 // pred_check_branch
      %122 = sbr.rel (0) target = $region49
    $region48: #{forward_batched.1} parent=1 // pred_region
      _
    $region49: #{forward_batched.1} parent=1 // pred_fallthru
      _
    // Predicated region
    $region50: #{forward_batched.1} parent=1 // pred_check
      _
    $region51: #{forward_batched.1} parent=1 // pred_check_branch
      %124 = sbr.rel (0) target = $region53
    $region52: #{forward_batched.1} parent=1 // pred_region
      %125 = dma.done [#allocation6], 64
    $region53: #{forward_batched.1} parent=1 // pred_fallthru
      _
    // Predicated region
    $region54: #{forward_batched.1} parent=1 // pred_check
      _
    $region55: #{forward_batched.1} parent=1 // pred_check_branch
      %127 = sbr.rel (0) target = $region57
    $region56: #{forward_batched.1} parent=1 // pred_region
      %128 = dma.done [#allocation9], 16
    $region57: #{forward_batched.1} parent=1 // pred_fallthru
      _
    // Predicated region
    $region58: #{forward_batched.1} parent=1 // pred_check
      _
    $region59: #{forward_batched.1} parent=1 // pred_check_branch
      %130 = sbr.rel (0) target = $region61
    $region60: #{forward_batched.1} parent=1 // pred_region
      %131 = dma.done [#allocation9], 1536
    $region61: #{forward_batched.1} parent=1 // pred_fallthru
      _
    // Predicated region
    $region62: #{forward_batched.1} parent=1 // pred_check
      _
    $region63: #{forward_batched.1} parent=1 // pred_check_branch
      %133 = sbr.rel (0) target = $region65
    $region64: #{forward_batched.1} parent=1 // pred_region
      %134 = dma.done [#allocation12], 48
    $region65: #{forward_batched.1} parent=1 // pred_fallthru
      _
    // Predicated region
    $region66: #{forward_batched.1} parent=1 // pred_check
      _
    $region67: #{forward_batched.1} parent=1 // pred_check_branch
      %136 = sbr.rel (0) target = $region69
    $region68: #{forward_batched.1} parent=1 // pred_region
      %137 = dma.done [#allocation12], 1536
    $region69: #{forward_batched.1} parent=1 // pred_fallthru
      _
    // Predicated region
    $region70: #{forward_batched.1} parent=1 // pred_check
      _
    $region71: #{forward_batched.1} parent=1 // pred_check_branch
      %139 = sbr.rel (0) target = $region73
    $region72: #{forward_batched.1} parent=1 // pred_region
      %140 = dma.done [#allocation15], 1024
    $region73: #{forward_batched.1} parent=1 // pred_fallthru
      _
    // Predicated region
    $region74: #{forward_batched.1} parent=1 // pred_check
      _
    $region75: #{forward_batched.1} parent=1 // pred_check_branch
      %142 = sbr.rel (0) target = $region77
    $region76: #{forward_batched.1} parent=1 // pred_region
      %143 = dma.done [#allocation15], 16
    $region77: #{forward_batched.1} parent=1 // pred_fallthru
      _
    // Predicated region
    $region78: #{forward_batched.1} parent=1 // pred_check
      _
    $region79: #{forward_batched.1} parent=1 // pred_check_branch
      %145 = sbr.rel (0) target = $region81
    $region80: #{forward_batched.1} parent=1 // pred_region
      %146 = dma.done [#allocation18], 16
    $region81: #{forward_batched.1} parent=1 // pred_fallthru
      _
    %v147 = vld [vmem:[%s0] sm:$0xff]
    %v148 = vld [vmem:[%s0 + $0x8] sm:$0xff]
    %v149 = vld [vmem:[%s1] sm:$0xff]
    %v150 = vld [vmem:[%s1 + $0x8] sm:$0xff]
    %v151 = vld [vmem:[#allocation5] sm:$0x1]
    %153 = vset.pattern.permute.xlu0 0
    %154 = vperm.xlu0 %153, %v147
    %v155 = vpop.permute.xlu0 %154
    %158 = vset.pattern.permute.xlu0 0
    %159 = vperm.xlu0 %158, %v148
    %v160 = vpop.permute.xlu0 %159
    %v162 = vlaneseq
    %v163 = vshrl.u32 %v162, 7
    %v164 = vsub.s32 0, %v163
    %v165 = vrot.slane %v151, %v164
    %v166 = vmul.f32 %v155, %v165
    %v167 = vmul.f32 %v160, %v165
    %v168 = vld [vmem:[#allocation5 + $0x1] sm:$0x1]
    %169 = vset.pattern.permute.xlu0 1
    %170 = vperm.xlu0 %169, %v147
    %v171 = vpop.permute.xlu0 %170
    %173 = vset.pattern.permute.xlu0 1
    %174 = vperm.xlu0 %173, %v148
    %v175 = vpop.permute.xlu0 %174
    %v177 = vlaneseq
    %v178 = vshrl.u32 %v177, 7
    %v179 = vsub.s32 0, %v178
    %v180 = vrot.slane %v168, %v179
    %v181 = vmul.f32 %v171, %v180
    %v182 = vmul.f32 %v175, %v180
    %v183 = vadd.f32 %v166, %v181
    %v184 = vadd.f32 %v167, %v182
    %v185 = vld [vmem:[#allocation5 + $0x2] sm:$0x1]
    %186 = vset.pattern.permute.xlu0 2
    %187 = vperm.xlu0 %186, %v147
    %v188 = vpop.permute.xlu0 %187
    %190 = vset.pattern.permute.xlu0 2
    %191 = vperm.xlu0 %190, %v148
    %v192 = vpop.permute.xlu0 %191
    %v194 = vlaneseq
    %v195 = vshrl.u32 %v194, 7
    %v196 = vsub.s32 0, %v195
    %v197 = vrot.slane %v185, %v196
    %v198 = vmul.f32 %v188, %v197
    %v199 = vmul.f32 %v192, %v197
    %v200 = vadd.f32 %v183, %v198
    %v201 = vadd.f32 %v184, %v199
    %v202 = vld [vmem:[#allocation8] sm:$0x1]
    %v204 = vlaneseq
    %v205 = vshrl.u32 %v204, 7
    %v206 = vsub.s32 0, %v205
    %v207 = vrot.slane %v202, %v206
    %v209 = vadd.f32 %v200, %v207
    %v210 = vadd.f32 %v201, %v207
    %v211 = vld [vmem:[#allocation10] sm:$0xff]
    %v212 = vld [vmem:[#allocation10 + $0x8] sm:$0xff]
    %v213 = vld [vmem:[#allocation10 + $0x10] sm:$0xff]
    %v214 = vld [vmem:[#allocation10 + $0x18] sm:$0xff]
    %v215 = vld [vmem:[#allocation11] sm:$0x1]
    %v217 = vlaneseq
    %v218 = vshrl.u32 %v217, 7
    %v219 = vsub.s32 0, %v218
    %v220 = vrot.slane %v215, %v219
    %vm222 = vcmask 261120
    %v224 = vsel %vm222, %v209, 0
    %v227 = vsel %vm222, %v210, 0
    %229 = vmatprep.subr.mxu0 0.0
    %230 = vmatpush1.msra.mxu0 0.0
    %231 = vmatprep.subr.mxu0 0.0
    %232 = vmatpush1.msra.mxu0 0.0
    %233 = vmatprep.subr.mxu0 0.0
    %234 = vmatpush1.msra.mxu0 0.0
    %235 = vmatprep.subr.mxu0 0.0
    %236 = vmatpush1.msra.mxu0 0.0
    %237 = vmatprep.subr.mxu0 0.0
    %238 = vmatpush1.msra.mxu0 0.0
    %239 = vmatprep.subr.mxu0 0.0
    %240 = vmatpush1.msra.mxu0 0.0
    %241 = vmatprep.subr.mxu0 0.0
    %242 = vmatpush1.msra.mxu0 0.0
    %243 = vmatprep.subr.mxu0 0.0
    %244 = vmatpush1.msra.mxu0 0.0
    %245 = vmatprep.subr.mxu0 0.0
    %246 = vmatpush1.msra.mxu0 0.0
    %247 = vmatprep.subr.mxu0 0.0
    %248 = vmatpush1.msra.mxu0 0.0
    %249 = vmatprep.subr.mxu0 0.0
    %250 = vmatpush1.msra.mxu0 0.0
    %251 = vmatprep.subr.mxu0 0.0
    %252 = vmatpush1.msra.mxu0 0.0
    %253 = vmatprep.subr.mxu0 0.0
    %254 = vmatpush1.msra.mxu0 %v214
    %255 = vmatprep.subr.mxu0 0.0
    %256 = vmatpush1.msra.mxu0 %v213
    %257 = vmatprep.subr.mxu0 0.0
    %258 = vmatpush1.msra.mxu0 %v212
    %259 = vmatprep.subr.mxu0 0.0
    %260 = vmatpush1.msra.mxu0 %v211
    %261 = vmatprep.subr.mxu0 0.0
    %262 = vmatpush2.msra.mxu0 0.0
    %263 = vmatprep.subr.mxu0 0.0
    %264 = vmatpush2.msra.mxu0 0.0
    %265 = vmatprep.subr.mxu0 0.0
    %266 = vmatpush2.msra.mxu0 0.0
    %267 = vmatprep.subr.mxu0 0.0
    %268 = vmatpush2.msra.mxu0 0.0
    %269 = vmatprep.subr.mxu0 0.0
    %270 = vmatpush2.msra.mxu0 0.0
    %271 = vmatprep.subr.mxu0 0.0
    %272 = vmatpush2.msra.mxu0 0.0
    %273 = vmatprep.subr.mxu0 0.0
    %274 = vmatpush2.msra.mxu0 0.0
    %275 = vmatprep.subr.mxu0 0.0
    %276 = vmatpush2.msra.mxu0 0.0
    %277 = vmatprep.subr.mxu0 0.0
    %278 = vmatpush2.msra.mxu0 0.0
    %279 = vmatprep.subr.mxu0 0.0
    %280 = vmatpush2.msra.mxu0 0.0
    %281 = vmatprep.subr.mxu0 0.0
    %282 = vmatpush2.msra.mxu0 0.0
    %283 = vmatprep.subr.mxu0 0.0
    %284 = vmatpush2.msra.mxu0 0.0
    %285 = vmatprep.subr.mxu0 0.0
    %286 = vmatpush2.msra.mxu0 0.0
    %287 = vmatprep.subr.mxu0 0.0
    %288 = vmatpush2.msra.mxu0 0.0
    %289 = vmatprep.subr.mxu0 0.0
    %290 = vmatpush2.msra.mxu0 0.0
    %291 = vmatprep.subr.mxu0 0.0
    %292 = vmatpush2.msra.mxu0 0.0
    %293 = vmatprep.mubr.f32.mxu0 0.0
    %294 = vmatmul.mubr.f32.gmra.mxu0 %v224
    %v295 = vpop.f32.mrf.mxu0
    %v296 = vadd.f32 %v220, %v295
    %v297 = vpop.f32.mrf.mxu0
    %298 = vmatprep.mubr.f32.mxu0 0.0
    %299 = vmatmul.mubr.f32.gmra.mxu0 %v227
    %v300 = vpop.f32.mrf.mxu0
    %v301 = vadd.f32 %v220, %v300
    %v302 = vpop.f32.mrf.mxu0
    %303 = vdwg.mxu0
    %vm304 = vcmask 130048
    %v306 = vsel %vm304, %v149, 0
    %v309 = vsel %vm304, %v150, 0
    %311 = vmatprep.subr.mxu0 0.0
    %312 = vmatpush1.msra.mxu0 0.0
    %313 = vmatprep.subr.mxu0 0.0
    %314 = vmatpush1.msra.mxu0 0.0
    %315 = vmatprep.subr.mxu0 0.0
    %316 = vmatpush1.msra.mxu0 0.0
    %317 = vmatprep.subr.mxu0 0.0
    %318 = vmatpush1.msra.mxu0 0.0
    %319 = vmatprep.subr.mxu0 0.0
    %320 = vmatpush1.msra.mxu0 0.0
    %321 = vmatprep.subr.mxu0 0.0
    %322 = vmatpush1.msra.mxu0 0.0
    %323 = vmatprep.subr.mxu0 0.0
    %324 = vmatpush1.msra.mxu0 0.0
    %325 = vmatprep.subr.mxu0 0.0
    %326 = vmatpush1.msra.mxu0 0.0
    %327 = vmatprep.subr.mxu0 0.0
    %328 = vmatpush1.msra.mxu0 0.0
    %329 = vmatprep.subr.mxu0 0.0
    %330 = vmatpush1.msra.mxu0 0.0
    %331 = vmatprep.subr.mxu0 0.0
    %332 = vmatpush1.msra.mxu0 0.0
    %333 = vmatprep.subr.mxu0 0.0
    %334 = vmatpush1.msra.mxu0 0.0
    %335 = vmatprep.subr.mxu0 0.0
    %336 = vmatpush1.msra.mxu0 0.0
    %337 = vmatprep.subr.mxu0 0.0
    %338 = vmatpush1.msra.mxu0 0.0
    %339 = vmatprep.subr.mxu0 0.0
    %340 = vmatpush1.msra.mxu0 %v301
    %341 = vmatprep.subr.mxu0 0.0
    %342 = vmatpush1.msra.mxu0 %v296
    %343 = vmatprep.subr.mxu0 0.0
    %344 = vmatpush2.msra.mxu0 0.0
    %345 = vmatprep.subr.mxu0 0.0
    %346 = vmatpush2.msra.mxu0 0.0
    %347 = vmatprep.subr.mxu0 0.0
    %348 = vmatpush2.msra.mxu0 0.0
    %349 = vmatprep.subr.mxu0 0.0
    %350 = vmatpush2.msra.mxu0 0.0
    %351 = vmatprep.subr.mxu0 0.0
    %352 = vmatpush2.msra.mxu0 0.0
    %353 = vmatprep.subr.mxu0 0.0
    %354 = vmatpush2.msra.mxu0 0.0
    %355 = vmatprep.subr.mxu0 0.0
    %356 = vmatpush2.msra.mxu0 0.0
    %357 = vmatprep.subr.mxu0 0.0
    %358 = vmatpush2.msra.mxu0 0.0
    %359 = vmatprep.subr.mxu0 0.0
    %360 = vmatpush2.msra.mxu0 0.0
    %361 = vmatprep.subr.mxu0 0.0
    %362 = vmatpush2.msra.mxu0 0.0
    %363 = vmatprep.subr.mxu0 0.0
    %364 = vmatpush2.msra.mxu0 0.0
    %365 = vmatprep.subr.mxu0 0.0
    %366 = vmatpush2.msra.mxu0 0.0
    %367 = vmatprep.subr.mxu0 0.0
    %368 = vmatpush2.msra.mxu0 0.0
    %369 = vmatprep.subr.mxu0 0.0
    %370 = vmatpush2.msra.mxu0 0.0
    %371 = vmatprep.subr.mxu0 0.0
    %372 = vmatpush2.msra.mxu0 0.0
    %373 = vmatprep.subr.mxu0 0.0
    %374 = vmatpush2.msra.mxu0 0.0
    %375 = vmatprep.mubr.f32.mxu0 0.0
    %376 = vmatmul.mubr.f32.gmra.mxu0 %v306
    %v377 = vpop.f32.mrf.mxu0
    %v378 = vadd.f32 0.0, %v377
    %v379 = vpop.f32.mrf.mxu0
    %380 = vmatprep.mubr.f32.mxu0 0.0
    %381 = vmatmul.mubr.f32.gmra.mxu0 %v309
    %v382 = vpop.f32.mrf.mxu0
    %v383 = vadd.f32 0.0, %v382
    %v384 = vpop.f32.mrf.mxu0
    %385 = vdwg.mxu0
    %v386 = vld [vmem:[#allocation13] sm:$0xff]
    %v387 = vld [vmem:[#allocation13 + $0x8] sm:$0xff]
    %v388 = vld [vmem:[#allocation13 + $0x10] sm:$0xff]
    %v389 = vld [vmem:[#allocation13 + $0x18] sm:$0xff]
    %v391 = vsel %vm222, %v378, 0
    %v394 = vsel %vm222, %v383, 0
    %396 = vmatprep.subr.mxu0 0.0
    %397 = vmatpush1.msra.mxu0 0.0
    %398 = vmatprep.subr.mxu0 0.0
    %399 = vmatpush1.msra.mxu0 0.0
    %400 = vmatprep.subr.mxu0 0.0
    %401 = vmatpush1.msra.mxu0 0.0
    %402 = vmatprep.subr.mxu0 0.0
    %403 = vmatpush1.msra.mxu0 0.0
    %404 = vmatprep.subr.mxu0 0.0
    %405 = vmatpush1.msra.mxu0 0.0
    %406 = vmatprep.subr.mxu0 0.0
    %407 = vmatpush1.msra.mxu0 0.0
    %408 = vmatprep.subr.mxu0 0.0
    %409 = vmatpush1.msra.mxu0 0.0
    %410 = vmatprep.subr.mxu0 0.0
    %411 = vmatpush1.msra.mxu0 0.0
    %412 = vmatprep.subr.mxu0 0.0
    %413 = vmatpush1.msra.mxu0 0.0
    %414 = vmatprep.subr.mxu0 0.0
    %415 = vmatpush1.msra.mxu0 0.0
    %416 = vmatprep.subr.mxu0 0.0
    %417 = vmatpush1.msra.mxu0 0.0
    %418 = vmatprep.subr.mxu0 0.0
    %419 = vmatpush1.msra.mxu0 0.0
    %420 = vmatprep.subr.mxu0 0.0
    %421 = vmatpush1.msra.mxu0 %v389
    %422 = vmatprep.subr.mxu0 0.0
    %423 = vmatpush1.msra.mxu0 %v388
    %424 = vmatprep.subr.mxu0 0.0
    %425 = vmatpush1.msra.mxu0 %v387
    %426 = vmatprep.subr.mxu0 0.0
    %427 = vmatpush1.msra.mxu0 %v386
    %428 = vmatprep.subr.mxu0 0.0
    %429 = vmatpush2.msra.mxu0 0.0
    %430 = vmatprep.subr.mxu0 0.0
    %431 = vmatpush2.msra.mxu0 0.0
    %432 = vmatprep.subr.mxu0 0.0
    %433 = vmatpush2.msra.mxu0 0.0
    %434 = vmatprep.subr.mxu0 0.0
    %435 = vmatpush2.msra.mxu0 0.0
    %436 = vmatprep.subr.mxu0 0.0
    %437 = vmatpush2.msra.mxu0 0.0
    %438 = vmatprep.subr.mxu0 0.0
    %439 = vmatpush2.msra.mxu0 0.0
    %440 = vmatprep.subr.mxu0 0.0
    %441 = vmatpush2.msra.mxu0 0.0
    %442 = vmatprep.subr.mxu0 0.0
    %443 = vmatpush2.msra.mxu0 0.0
    %444 = vmatprep.subr.mxu0 0.0
    %445 = vmatpush2.msra.mxu0 0.0
    %446 = vmatprep.subr.mxu0 0.0
    %447 = vmatpush2.msra.mxu0 0.0
    %448 = vmatprep.subr.mxu0 0.0
    %449 = vmatpush2.msra.mxu0 0.0
    %450 = vmatprep.subr.mxu0 0.0
    %451 = vmatpush2.msra.mxu0 0.0
    %452 = vmatprep.subr.mxu0 0.0
    %453 = vmatpush2.msra.mxu0 0.0
    %454 = vmatprep.subr.mxu0 0.0
    %455 = vmatpush2.msra.mxu0 0.0
    %456 = vmatprep.subr.mxu0 0.0
    %457 = vmatpush2.msra.mxu0 0.0
    %458 = vmatprep.subr.mxu0 0.0
    %459 = vmatpush2.msra.mxu0 0.0
    %460 = vmatprep.mubr.f32.mxu0 0.0
    %461 = vmatmul.mubr.f32.gmra.mxu0 %v391
    %v462 = vpop.f32.mrf.mxu0
    %v463 = vadd.f32 0.0, %v462
    %v464 = vpop.f32.mrf.mxu0
    %465 = vmatprep.mubr.f32.mxu0 0.0
    %466 = vmatmul.mubr.f32.gmra.mxu0 %v394
    %v467 = vpop.f32.mrf.mxu0
    %v468 = vadd.f32 0.0, %v467
    %v469 = vpop.f32.mrf.mxu0
    %470 = vdwg.mxu0
    %473 = vrot.lane.b32.xlu0 %v463, 32
    %v474 = vpop.permute.xlu0 %473
    %475 = vrot.lane.b32.xlu0 %v468, 32
    %v476 = vpop.permute.xlu0 %475
    %v479 = vadd.f32 %v296, %v474
    %v480 = vadd.f32 %v301, %v476
    %v481 = vxor.u32 %v479, 2147483648
    %v482 = vxor.u32 %v480, 2147483648
    %v483 = vmul.f32 %v481, 1.442695
    %v484 = vpow.pop %v483
    %v485 = vmul.f32 %v482, 1.442695
    %v486 = vpow.pop %v485
    %v487 = vadd.f32 %v484, 1.0
    %v488 = vadd.f32 %v486, 1.0
    %v489 = vrcp.pop %v487
    %v490 = vmul.f32 1.0, %v489
    %v491 = vrcp.pop %v488
    %v492 = vmul.f32 1.0, %v491
    %493 = vrot.lane.b32.xlu0 %v378, 32
    %v494 = vpop.permute.xlu0 %493
    %495 = vrot.lane.b32.xlu0 %v383, 32
    %v496 = vpop.permute.xlu0 %495
    %v499 = vmul.f32 %v490, %v494
    %v500 = vmul.f32 %v492, %v496
    %503 = vrot.lane.b32.xlu0 %v499, 96
    %v504 = vpop.permute.xlu0 %503
    %505 = vrot.lane.b32.xlu0 %v500, 96
    %v506 = vpop.permute.xlu0 %505
    %v509 = vadd.f32 %v209, %v504
    %v510 = vadd.f32 %v210, %v506
    %v511 = vmax.f32 %v509, 0.0
    %v512 = vmax.f32 %v510, 0.0
    %s513 = scalar_lea.vmem [#allocation10], 32
    %v514 = vld [vmem:[%s513] sm:$0xff]
    %v515 = vld [vmem:[%s513 + $0x8] sm:$0xff]
    %v516 = vld [vmem:[%s513 + $0x10] sm:$0xff]
    %v517 = vld [vmem:[%s513 + $0x18] sm:$0xff]
    %s518 = scalar_lea.vmem [#allocation11], 1
    %v519 = vld [vmem:[%s518] sm:$0x1]
    %v521 = vlaneseq
    %v522 = vshrl.u32 %v521, 7
    %v523 = vsub.s32 0, %v522
    %v524 = vrot.slane %v519, %v523
    %v527 = vsel %vm222, %v511, 0
    %v530 = vsel %vm222, %v512, 0
    %532 = vmatprep.subr.mxu0 0.0
    %533 = vmatpush1.msra.mxu0 0.0
    %534 = vmatprep.subr.mxu0 0.0
    %535 = vmatpush1.msra.mxu0 0.0
    %536 = vmatprep.subr.mxu0 0.0
    %537 = vmatpush1.msra.mxu0 0.0
    %538 = vmatprep.subr.mxu0 0.0
    %539 = vmatpush1.msra.mxu0 0.0
    %540 = vmatprep.subr.mxu0 0.0
    %541 = vmatpush1.msra.mxu0 0.0
    %542 = vmatprep.subr.mxu0 0.0
    %543 = vmatpush1.msra.mxu0 0.0
    %544 = vmatprep.subr.mxu0 0.0
    %545 = vmatpush1.msra.mxu0 0.0
    %546 = vmatprep.subr.mxu0 0.0
    %547 = vmatpush1.msra.mxu0 0.0
    %548 = vmatprep.subr.mxu0 0.0
    %549 = vmatpush1.msra.mxu0 0.0
    %550 = vmatprep.subr.mxu0 0.0
    %551 = vmatpush1.msra.mxu0 0.0
    %552 = vmatprep.subr.mxu0 0.0
    %553 = vmatpush1.msra.mxu0 0.0
    %554 = vmatprep.subr.mxu0 0.0
    %555 = vmatpush1.msra.mxu0 0.0
    %556 = vmatprep.subr.mxu0 0.0
    %557 = vmatpush1.msra.mxu0 %v517
    %558 = vmatprep.subr.mxu0 0.0
    %559 = vmatpush1.msra.mxu0 %v516
    %560 = vmatprep.subr.mxu0 0.0
    %561 = vmatpush1.msra.mxu0 %v515
    %562 = vmatprep.subr.mxu0 0.0
    %563 = vmatpush1.msra.mxu0 %v514
    %564 = vmatprep.subr.mxu0 0.0
    %565 = vmatpush2.msra.mxu0 0.0
    %566 = vmatprep.subr.mxu0 0.0
    %567 = vmatpush2.msra.mxu0 0.0
    %568 = vmatprep.subr.mxu0 0.0
    %569 = vmatpush2.msra.mxu0 0.0
    %570 = vmatprep.subr.mxu0 0.0
    %571 = vmatpush2.msra.mxu0 0.0
    %572 = vmatprep.subr.mxu0 0.0
    %573 = vmatpush2.msra.mxu0 0.0
    %574 = vmatprep.subr.mxu0 0.0
    %575 = vmatpush2.msra.mxu0 0.0
    %576 = vmatprep.subr.mxu0 0.0
    %577 = vmatpush2.msra.mxu0 0.0
    %578 = vmatprep.subr.mxu0 0.0
    %579 = vmatpush2.msra.mxu0 0.0
    %580 = vmatprep.subr.mxu0 0.0
    %581 = vmatpush2.msra.mxu0 0.0
    %582 = vmatprep.subr.mxu0 0.0
    %583 = vmatpush2.msra.mxu0 0.0
    %584 = vmatprep.subr.mxu0 0.0
    %585 = vmatpush2.msra.mxu0 0.0
    %586 = vmatprep.subr.mxu0 0.0
    %587 = vmatpush2.msra.mxu0 0.0
    %588 = vmatprep.subr.mxu0 0.0
    %589 = vmatpush2.msra.mxu0 0.0
    %590 = vmatprep.subr.mxu0 0.0
    %591 = vmatpush2.msra.mxu0 0.0
    %592 = vmatprep.subr.mxu0 0.0
    %593 = vmatpush2.msra.mxu0 0.0
    %594 = vmatprep.subr.mxu0 0.0
    %595 = vmatpush2.msra.mxu0 0.0
    %596 = vmatprep.mubr.f32.mxu0 0.0
    %597 = vmatmul.mubr.f32.gmra.mxu0 %v527
    %v598 = vpop.f32.mrf.mxu0
    %v599 = vadd.f32 %v524, %v598
    %v600 = vpop.f32.mrf.mxu0
    %601 = vmatprep.mubr.f32.mxu0 0.0
    %602 = vmatmul.mubr.f32.gmra.mxu0 %v530
    %v603 = vpop.f32.mrf.mxu0
    %v604 = vadd.f32 %v524, %v603
    %v605 = vpop.f32.mrf.mxu0
    %606 = vdwg.mxu0
    %607 = vmatprep.subr.mxu0 0.0
    %608 = vmatpush1.msra.mxu0 0.0
    %609 = vmatprep.subr.mxu0 0.0
    %610 = vmatpush1.msra.mxu0 0.0
    %611 = vmatprep.subr.mxu0 0.0
    %612 = vmatpush1.msra.mxu0 0.0
    %613 = vmatprep.subr.mxu0 0.0
    %614 = vmatpush1.msra.mxu0 0.0
    %615 = vmatprep.subr.mxu0 0.0
    %616 = vmatpush1.msra.mxu0 0.0
    %617 = vmatprep.subr.mxu0 0.0
    %618 = vmatpush1.msra.mxu0 0.0
    %619 = vmatprep.subr.mxu0 0.0
    %620 = vmatpush1.msra.mxu0 0.0
    %621 = vmatprep.subr.mxu0 0.0
    %622 = vmatpush1.msra.mxu0 0.0
    %623 = vmatprep.subr.mxu0 0.0
    %624 = vmatpush1.msra.mxu0 0.0
    %625 = vmatprep.subr.mxu0 0.0
    %626 = vmatpush1.msra.mxu0 0.0
    %627 = vmatprep.subr.mxu0 0.0
    %628 = vmatpush1.msra.mxu0 0.0
    %629 = vmatprep.subr.mxu0 0.0
    %630 = vmatpush1.msra.mxu0 0.0
    %631 = vmatprep.subr.mxu0 0.0
    %632 = vmatpush1.msra.mxu0 0.0
    %633 = vmatprep.subr.mxu0 0.0
    %634 = vmatpush1.msra.mxu0 0.0
    %635 = vmatprep.subr.mxu0 0.0
    %636 = vmatpush1.msra.mxu0 %v604
    %637 = vmatprep.subr.mxu0 0.0
    %638 = vmatpush1.msra.mxu0 %v599
    %639 = vmatprep.subr.mxu0 0.0
    %640 = vmatpush2.msra.mxu0 0.0
    %641 = vmatprep.subr.mxu0 0.0
    %642 = vmatpush2.msra.mxu0 0.0
    %643 = vmatprep.subr.mxu0 0.0
    %644 = vmatpush2.msra.mxu0 0.0
    %645 = vmatprep.subr.mxu0 0.0
    %646 = vmatpush2.msra.mxu0 0.0
    %647 = vmatprep.subr.mxu0 0.0
    %648 = vmatpush2.msra.mxu0 0.0
    %649 = vmatprep.subr.mxu0 0.0
    %650 = vmatpush2.msra.mxu0 0.0
    %651 = vmatprep.subr.mxu0 0.0
    %652 = vmatpush2.msra.mxu0 0.0
    %653 = vmatprep.subr.mxu0 0.0
    %654 = vmatpush2.msra.mxu0 0.0
    %655 = vmatprep.subr.mxu0 0.0
    %656 = vmatpush2.msra.mxu0 0.0
    %657 = vmatprep.subr.mxu0 0.0
    %658 = vmatpush2.msra.mxu0 0.0
    %659 = vmatprep.subr.mxu0 0.0
    %660 = vmatpush2.msra.mxu0 0.0
    %661 = vmatprep.subr.mxu0 0.0
    %662 = vmatpush2.msra.mxu0 0.0
    %663 = vmatprep.subr.mxu0 0.0
    %664 = vmatpush2.msra.mxu0 0.0
    %665 = vmatprep.subr.mxu0 0.0
    %666 = vmatpush2.msra.mxu0 0.0
    %667 = vmatprep.subr.mxu0 0.0
    %668 = vmatpush2.msra.mxu0 0.0
    %669 = vmatprep.subr.mxu0 0.0
    %670 = vmatpush2.msra.mxu0 0.0
    %671 = vmatprep.mubr.f32.mxu0 0.0
    %672 = vmatmul.mubr.f32.gmra.mxu0 %v306
    %v673 = vpop.f32.mrf.mxu0
    %v674 = vadd.f32 0.0, %v673
    %v675 = vpop.f32.mrf.mxu0
    %676 = vmatprep.mubr.f32.mxu0 0.0
    %677 = vmatmul.mubr.f32.gmra.mxu0 %v309
    %v678 = vpop.f32.mrf.mxu0
    %v679 = vadd.f32 0.0, %v678
    %v680 = vpop.f32.mrf.mxu0
    %681 = vdwg.mxu0
    %s682 = scalar_lea.vmem [#allocation13], 32
    %v683 = vld [vmem:[%s682] sm:$0xff]
    %v684 = vld [vmem:[%s682 + $0x8] sm:$0xff]
    %v685 = vld [vmem:[%s682 + $0x10] sm:$0xff]
    %v686 = vld [vmem:[%s682 + $0x18] sm:$0xff]
    %v688 = vsel %vm222, %v674, 0
    %v691 = vsel %vm222, %v679, 0
    %693 = vmatprep.subr.mxu0 0.0
    %694 = vmatpush1.msra.mxu0 0.0
    %695 = vmatprep.subr.mxu0 0.0
    %696 = vmatpush1.msra.mxu0 0.0
    %697 = vmatprep.subr.mxu0 0.0
    %698 = vmatpush1.msra.mxu0 0.0
    %699 = vmatprep.subr.mxu0 0.0
    %700 = vmatpush1.msra.mxu0 0.0
    %701 = vmatprep.subr.mxu0 0.0
    %702 = vmatpush1.msra.mxu0 0.0
    %703 = vmatprep.subr.mxu0 0.0
    %704 = vmatpush1.msra.mxu0 0.0
    %705 = vmatprep.subr.mxu0 0.0
    %706 = vmatpush1.msra.mxu0 0.0
    %707 = vmatprep.subr.mxu0 0.0
    %708 = vmatpush1.msra.mxu0 0.0
    %709 = vmatprep.subr.mxu0 0.0
    %710 = vmatpush1.msra.mxu0 0.0
    %711 = vmatprep.subr.mxu0 0.0
    %712 = vmatpush1.msra.mxu0 0.0
    %713 = vmatprep.subr.mxu0 0.0
    %714 = vmatpush1.msra.mxu0 0.0
    %715 = vmatprep.subr.mxu0 0.0
    %716 = vmatpush1.msra.mxu0 0.0
    %717 = vmatprep.subr.mxu0 0.0
    %718 = vmatpush1.msra.mxu0 %v686
    %719 = vmatprep.subr.mxu0 0.0
    %720 = vmatpush1.msra.mxu0 %v685
    %721 = vmatprep.subr.mxu0 0.0
    %722 = vmatpush1.msra.mxu0 %v684
    %723 = vmatprep.subr.mxu0 0.0
    %724 = vmatpush1.msra.mxu0 %v683
    %725 = vmatprep.subr.mxu0 0.0
    %726 = vmatpush2.msra.mxu0 0.0
    %727 = vmatprep.subr.mxu0 0.0
    %728 = vmatpush2.msra.mxu0 0.0
    %729 = vmatprep.subr.mxu0 0.0
    %730 = vmatpush2.msra.mxu0 0.0
    %731 = vmatprep.subr.mxu0 0.0
    %732 = vmatpush2.msra.mxu0 0.0
    %733 = vmatprep.subr.mxu0 0.0
    %734 = vmatpush2.msra.mxu0 0.0
    %735 = vmatprep.subr.mxu0 0.0
    %736 = vmatpush2.msra.mxu0 0.0
    %737 = vmatprep.subr.mxu0 0.0
    %738 = vmatpush2.msra.mxu0 0.0
    %739 = vmatprep.subr.mxu0 0.0
    %740 = vmatpush2.msra.mxu0 0.0
    %741 = vmatprep.subr.mxu0 0.0
    %742 = vmatpush2.msra.mxu0 0.0
    %743 = vmatprep.subr.mxu0 0.0
    %744 = vmatpush2.msra.mxu0 0.0
    %745 = vmatprep.subr.mxu0 0.0
    %746 = vmatpush2.msra.mxu0 0.0
    %747 = vmatprep.subr.mxu0 0.0
    %748 = vmatpush2.msra.mxu0 0.0
    %749 = vmatprep.subr.mxu0 0.0
    %750 = vmatpush2.msra.mxu0 0.0
    %751 = vmatprep.subr.mxu0 0.0
    %752 = vmatpush2.msra.mxu0 0.0
    %753 = vmatprep.subr.mxu0 0.0
    %754 = vmatpush2.msra.mxu0 0.0
    %755 = vmatprep.subr.mxu0 0.0
    %756 = vmatpush2.msra.mxu0 0.0
    %757 = vmatprep.mubr.f32.mxu0 0.0
    %758 = vmatmul.mubr.f32.gmra.mxu0 %v688
    %v759 = vpop.f32.mrf.mxu0
    %v760 = vadd.f32 0.0, %v759
    %v761 = vpop.f32.mrf.mxu0
    %762 = vmatprep.mubr.f32.mxu0 0.0
    %763 = vmatmul.mubr.f32.gmra.mxu0 %v691
    %v764 = vpop.f32.mrf.mxu0
    %v765 = vadd.f32 0.0, %v764
    %v766 = vpop.f32.mrf.mxu0
    %767 = vdwg.mxu0
    %770 = vrot.lane.b32.xlu0 %v760, 32
    %v771 = vpop.permute.xlu0 %770
    %772 = vrot.lane.b32.xlu0 %v765, 32
    %v773 = vpop.permute.xlu0 %772
    %v776 = vadd.f32 %v599, %v771
    %v777 = vadd.f32 %v604, %v773
    %v778 = vxor.u32 %v776, 2147483648
    %v779 = vxor.u32 %v777, 2147483648
    %v780 = vmul.f32 %v778, 1.442695
    %v781 = vpow.pop %v780
    %v782 = vmul.f32 %v779, 1.442695
    %v783 = vpow.pop %v782
    %v784 = vadd.f32 %v781, 1.0
    %v785 = vadd.f32 %v783, 1.0
    %v786 = vrcp.pop %v784
    %v787 = vmul.f32 1.0, %v786
    %v788 = vrcp.pop %v785
    %v789 = vmul.f32 1.0, %v788
    %790 = vrot.lane.b32.xlu0 %v674, 32
    %v791 = vpop.permute.xlu0 %790
    %792 = vrot.lane.b32.xlu0 %v679, 32
    %v793 = vpop.permute.xlu0 %792
    %v796 = vmul.f32 %v787, %v791
    %v797 = vmul.f32 %v789, %v793
    %800 = vrot.lane.b32.xlu0 %v796, 96
    %v801 = vpop.permute.xlu0 %800
    %802 = vrot.lane.b32.xlu0 %v797, 96
    %v803 = vpop.permute.xlu0 %802
    %v806 = vadd.f32 %v511, %v801
    %v807 = vadd.f32 %v512, %v803
    %v808 = vmax.f32 %v806, 0.0
    %v809 = vmax.f32 %v807, 0.0
    %s810 = scalar_lea.vmem [#allocation10], 64
    %v811 = vld [vmem:[%s810] sm:$0xff]
    %v812 = vld [vmem:[%s810 + $0x8] sm:$0xff]
    %v813 = vld [vmem:[%s810 + $0x10] sm:$0xff]
    %v814 = vld [vmem:[%s810 + $0x18] sm:$0xff]
    %s815 = scalar_lea.vmem [#allocation11], 2
    %v816 = vld [vmem:[%s815] sm:$0x1]
    %v818 = vlaneseq
    %v819 = vshrl.u32 %v818, 7
    %v820 = vsub.s32 0, %v819
    %v821 = vrot.slane %v816, %v820
    %v824 = vsel %vm222, %v808, 0
    %v827 = vsel %vm222, %v809, 0
    %829 = vmatprep.subr.mxu0 0.0
    %830 = vmatpush1.msra.mxu0 0.0
    %831 = vmatprep.subr.mxu0 0.0
    %832 = vmatpush1.msra.mxu0 0.0
    %833 = vmatprep.subr.mxu0 0.0
    %834 = vmatpush1.msra.mxu0 0.0
    %835 = vmatprep.subr.mxu0 0.0
    %836 = vmatpush1.msra.mxu0 0.0
    %837 = vmatprep.subr.mxu0 0.0
    %838 = vmatpush1.msra.mxu0 0.0
    %839 = vmatprep.subr.mxu0 0.0
    %840 = vmatpush1.msra.mxu0 0.0
    %841 = vmatprep.subr.mxu0 0.0
    %842 = vmatpush1.msra.mxu0 0.0
    %843 = vmatprep.subr.mxu0 0.0
    %844 = vmatpush1.msra.mxu0 0.0
    %845 = vmatprep.subr.mxu0 0.0
    %846 = vmatpush1.msra.mxu0 0.0
    %847 = vmatprep.subr.mxu0 0.0
    %848 = vmatpush1.msra.mxu0 0.0
    %849 = vmatprep.subr.mxu0 0.0
    %850 = vmatpush1.msra.mxu0 0.0
    %851 = vmatprep.subr.mxu0 0.0
    %852 = vmatpush1.msra.mxu0 0.0
    %853 = vmatprep.subr.mxu0 0.0
    %854 = vmatpush1.msra.mxu0 %v814
    %855 = vmatprep.subr.mxu0 0.0
    %856 = vmatpush1.msra.mxu0 %v813
    %857 = vmatprep.subr.mxu0 0.0
    %858 = vmatpush1.msra.mxu0 %v812
    %859 = vmatprep.subr.mxu0 0.0
    %860 = vmatpush1.msra.mxu0 %v811
    %861 = vmatprep.subr.mxu0 0.0
    %862 = vmatpush2.msra.mxu0 0.0
    %863 = vmatprep.subr.mxu0 0.0
    %864 = vmatpush2.msra.mxu0 0.0
    %865 = vmatprep.subr.mxu0 0.0
    %866 = vmatpush2.msra.mxu0 0.0
    %867 = vmatprep.subr.mxu0 0.0
    %868 = vmatpush2.msra.mxu0 0.0
    %869 = vmatprep.subr.mxu0 0.0
    %870 = vmatpush2.msra.mxu0 0.0
    %871 = vmatprep.subr.mxu0 0.0
    %872 = vmatpush2.msra.mxu0 0.0
    %873 = vmatprep.subr.mxu0 0.0
    %874 = vmatpush2.msra.mxu0 0.0
    %875 = vmatprep.subr.mxu0 0.0
    %876 = vmatpush2.msra.mxu0 0.0
    %877 = vmatprep.subr.mxu0 0.0
    %878 = vmatpush2.msra.mxu0 0.0
    %879 = vmatprep.subr.mxu0 0.0
    %880 = vmatpush2.msra.mxu0 0.0
    %881 = vmatprep.subr.mxu0 0.0
    %882 = vmatpush2.msra.mxu0 0.0
    %883 = vmatprep.subr.mxu0 0.0
    %884 = vmatpush2.msra.mxu0 0.0
    %885 = vmatprep.subr.mxu0 0.0
    %886 = vmatpush2.msra.mxu0 0.0
    %887 = vmatprep.subr.mxu0 0.0
    %888 = vmatpush2.msra.mxu0 0.0
    %889 = vmatprep.subr.mxu0 0.0
    %890 = vmatpush2.msra.mxu0 0.0
    %891 = vmatprep.subr.mxu0 0.0
    %892 = vmatpush2.msra.mxu0 0.0
    %893 = vmatprep.mubr.f32.mxu0 0.0
    %894 = vmatmul.mubr.f32.gmra.mxu0 %v824
    %v895 = vpop.f32.mrf.mxu0
    %v896 = vadd.f32 %v821, %v895
    %v897 = vpop.f32.mrf.mxu0
    %898 = vmatprep.mubr.f32.mxu0 0.0
    %899 = vmatmul.mubr.f32.gmra.mxu0 %v827
    %v900 = vpop.f32.mrf.mxu0
    %v901 = vadd.f32 %v821, %v900
    %v902 = vpop.f32.mrf.mxu0
    %903 = vdwg.mxu0
    %904 = vmatprep.subr.mxu0 0.0
    %905 = vmatpush1.msra.mxu0 0.0
    %906 = vmatprep.subr.mxu0 0.0
    %907 = vmatpush1.msra.mxu0 0.0
    %908 = vmatprep.subr.mxu0 0.0
    %909 = vmatpush1.msra.mxu0 0.0
    %910 = vmatprep.subr.mxu0 0.0
    %911 = vmatpush1.msra.mxu0 0.0
    %912 = vmatprep.subr.mxu0 0.0
    %913 = vmatpush1.msra.mxu0 0.0
    %914 = vmatprep.subr.mxu0 0.0
    %915 = vmatpush1.msra.mxu0 0.0
    %916 = vmatprep.subr.mxu0 0.0
    %917 = vmatpush1.msra.mxu0 0.0
    %918 = vmatprep.subr.mxu0 0.0
    %919 = vmatpush1.msra.mxu0 0.0
    %920 = vmatprep.subr.mxu0 0.0
    %921 = vmatpush1.msra.mxu0 0.0
    %922 = vmatprep.subr.mxu0 0.0
    %923 = vmatpush1.msra.mxu0 0.0
    %924 = vmatprep.subr.mxu0 0.0
    %925 = vmatpush1.msra.mxu0 0.0
    %926 = vmatprep.subr.mxu0 0.0
    %927 = vmatpush1.msra.mxu0 0.0
    %928 = vmatprep.subr.mxu0 0.0
    %929 = vmatpush1.msra.mxu0 0.0
    %930 = vmatprep.subr.mxu0 0.0
    %931 = vmatpush1.msra.mxu0 0.0
    %932 = vmatprep.subr.mxu0 0.0
    %933 = vmatpush1.msra.mxu0 %v901
    %934 = vmatprep.subr.mxu0 0.0
    %935 = vmatpush1.msra.mxu0 %v896
    %936 = vmatprep.subr.mxu0 0.0
    %937 = vmatpush2.msra.mxu0 0.0
    %938 = vmatprep.subr.mxu0 0.0
    %939 = vmatpush2.msra.mxu0 0.0
    %940 = vmatprep.subr.mxu0 0.0
    %941 = vmatpush2.msra.mxu0 0.0
    %942 = vmatprep.subr.mxu0 0.0
    %943 = vmatpush2.msra.mxu0 0.0
    %944 = vmatprep.subr.mxu0 0.0
    %945 = vmatpush2.msra.mxu0 0.0
    %946 = vmatprep.subr.mxu0 0.0
    %947 = vmatpush2.msra.mxu0 0.0
    %948 = vmatprep.subr.mxu0 0.0
    %949 = vmatpush2.msra.mxu0 0.0
    %950 = vmatprep.subr.mxu0 0.0
    %951 = vmatpush2.msra.mxu0 0.0
    %952 = vmatprep.subr.mxu0 0.0
    %953 = vmatpush2.msra.mxu0 0.0
    %954 = vmatprep.subr.mxu0 0.0
    %955 = vmatpush2.msra.mxu0 0.0
    %956 = vmatprep.subr.mxu0 0.0
    %957 = vmatpush2.msra.mxu0 0.0
    %958 = vmatprep.subr.mxu0 0.0
    %959 = vmatpush2.msra.mxu0 0.0
    %960 = vmatprep.subr.mxu0 0.0
    %961 = vmatpush2.msra.mxu0 0.0
    %962 = vmatprep.subr.mxu0 0.0
    %963 = vmatpush2.msra.mxu0 0.0
    %964 = vmatprep.subr.mxu0 0.0
    %965 = vmatpush2.msra.mxu0 0.0
    %966 = vmatprep.subr.mxu0 0.0
    %967 = vmatpush2.msra.mxu0 0.0
    %968 = vmatprep.mubr.f32.mxu0 0.0
    %969 = vmatmul.mubr.f32.gmra.mxu0 %v306
    %v970 = vpop.f32.mrf.mxu0
    %v971 = vadd.f32 0.0, %v970
    %v972 = vpop.f32.mrf.mxu0
    %973 = vmatprep.mubr.f32.mxu0 0.0
    %974 = vmatmul.mubr.f32.gmra.mxu0 %v309
    %v975 = vpop.f32.mrf.mxu0
    %v976 = vadd.f32 0.0, %v975
    %v977 = vpop.f32.mrf.mxu0
    %978 = vdwg.mxu0
    %s979 = scalar_lea.vmem [#allocation13], 64
    %v980 = vld [vmem:[%s979] sm:$0xff]
    %v981 = vld [vmem:[%s979 + $0x8] sm:$0xff]
    %v982 = vld [vmem:[%s979 + $0x10] sm:$0xff]
    %v983 = vld [vmem:[%s979 + $0x18] sm:$0xff]
    %v985 = vsel %vm222, %v971, 0
    %v988 = vsel %vm222, %v976, 0
    %990 = vmatprep.subr.mxu0 0.0
    %991 = vmatpush1.msra.mxu0 0.0
    %992 = vmatprep.subr.mxu0 0.0
    %993 = vmatpush1.msra.mxu0 0.0
    %994 = vmatprep.subr.mxu0 0.0
    %995 = vmatpush1.msra.mxu0 0.0
    %996 = vmatprep.subr.mxu0 0.0
    %997 = vmatpush1.msra.mxu0 0.0
    %998 = vmatprep.subr.mxu0 0.0
    %999 = vmatpush1.msra.mxu0 0.0
    %1000 = vmatprep.subr.mxu0 0.0
    %1001 = vmatpush1.msra.mxu0 0.0
    %1002 = vmatprep.subr.mxu0 0.0
    %1003 = vmatpush1.msra.mxu0 0.0
    %1004 = vmatprep.subr.mxu0 0.0
    %1005 = vmatpush1.msra.mxu0 0.0
    %1006 = vmatprep.subr.mxu0 0.0
    %1007 = vmatpush1.msra.mxu0 0.0
    %1008 = vmatprep.subr.mxu0 0.0
    %1009 = vmatpush1.msra.mxu0 0.0
    %1010 = vmatprep.subr.mxu0 0.0
    %1011 = vmatpush1.msra.mxu0 0.0
    %1012 = vmatprep.subr.mxu0 0.0
    %1013 = vmatpush1.msra.mxu0 0.0
    %1014 = vmatprep.subr.mxu0 0.0
    %1015 = vmatpush1.msra.mxu0 %v983
    %1016 = vmatprep.subr.mxu0 0.0
    %1017 = vmatpush1.msra.mxu0 %v982
    %1018 = vmatprep.subr.mxu0 0.0
    %1019 = vmatpush1.msra.mxu0 %v981
    %1020 = vmatprep.subr.mxu0 0.0
    %1021 = vmatpush1.msra.mxu0 %v980
    %1022 = vmatprep.subr.mxu0 0.0
    %1023 = vmatpush2.msra.mxu0 0.0
    %1024 = vmatprep.subr.mxu0 0.0
    %1025 = vmatpush2.msra.mxu0 0.0
    %1026 = vmatprep.subr.mxu0 0.0
    %1027 = vmatpush2.msra.mxu0 0.0
    %1028 = vmatprep.subr.mxu0 0.0
    %1029 = vmatpush2.msra.mxu0 0.0
    %1030 = vmatprep.subr.mxu0 0.0
    %1031 = vmatpush2.msra.mxu0 0.0
    %1032 = vmatprep.subr.mxu0 0.0
    %1033 = vmatpush2.msra.mxu0 0.0
    %1034 = vmatprep.subr.mxu0 0.0
    %1035 = vmatpush2.msra.mxu0 0.0
    %1036 = vmatprep.subr.mxu0 0.0
    %1037 = vmatpush2.msra.mxu0 0.0
    %1038 = vmatprep.subr.mxu0 0.0
    %1039 = vmatpush2.msra.mxu0 0.0
    %1040 = vmatprep.subr.mxu0 0.0
    %1041 = vmatpush2.msra.mxu0 0.0
    %1042 = vmatprep.subr.mxu0 0.0
    %1043 = vmatpush2.msra.mxu0 0.0
    %1044 = vmatprep.subr.mxu0 0.0
    %1045 = vmatpush2.msra.mxu0 0.0
    %1046 = vmatprep.subr.mxu0 0.0
    %1047 = vmatpush2.msra.mxu0 0.0
    %1048 = vmatprep.subr.mxu0 0.0
    %1049 = vmatpush2.msra.mxu0 0.0
    %1050 = vmatprep.subr.mxu0 0.0
    %1051 = vmatpush2.msra.mxu0 0.0
    %1052 = vmatprep.subr.mxu0 0.0
    %1053 = vmatpush2.msra.mxu0 0.0
    %1054 = vmatprep.mubr.f32.mxu0 0.0
    %1055 = vmatmul.mubr.f32.gmra.mxu0 %v985
    %v1056 = vpop.f32.mrf.mxu0
    %v1057 = vadd.f32 0.0, %v1056
    %v1058 = vpop.f32.mrf.mxu0
    %1059 = vmatprep.mubr.f32.mxu0 0.0
    %1060 = vmatmul.mubr.f32.gmra.mxu0 %v988
    %v1061 = vpop.f32.mrf.mxu0
    %v1062 = vadd.f32 0.0, %v1061
    %v1063 = vpop.f32.mrf.mxu0
    %1064 = vdwg.mxu0
    %1067 = vrot.lane.b32.xlu0 %v1057, 32
    %v1068 = vpop.permute.xlu0 %1067
    %1069 = vrot.lane.b32.xlu0 %v1062, 32
    %v1070 = vpop.permute.xlu0 %1069
    %v1073 = vadd.f32 %v896, %v1068
    %v1074 = vadd.f32 %v901, %v1070
    %v1075 = vxor.u32 %v1073, 2147483648
    %v1076 = vxor.u32 %v1074, 2147483648
    %v1077 = vmul.f32 %v1075, 1.442695
    %v1078 = vpow.pop %v1077
    %v1079 = vmul.f32 %v1076, 1.442695
    %v1080 = vpow.pop %v1079
    %v1081 = vadd.f32 %v1078, 1.0
    %v1082 = vadd.f32 %v1080, 1.0
    %v1083 = vrcp.pop %v1081
    %v1084 = vmul.f32 1.0, %v1083
    %v1085 = vrcp.pop %v1082
    %v1086 = vmul.f32 1.0, %v1085
    %1087 = vrot.lane.b32.xlu0 %v971, 32
    %v1088 = vpop.permute.xlu0 %1087
    %1089 = vrot.lane.b32.xlu0 %v976, 32
    %v1090 = vpop.permute.xlu0 %1089
    %v1093 = vmul.f32 %v1084, %v1088
    %v1094 = vmul.f32 %v1086, %v1090
    %1097 = vrot.lane.b32.xlu0 %v1093, 96
    %v1098 = vpop.permute.xlu0 %1097
    %1099 = vrot.lane.b32.xlu0 %v1094, 96
    %v1100 = vpop.permute.xlu0 %1099
    %v1103 = vadd.f32 %v808, %v1098
    %v1104 = vadd.f32 %v809, %v1100
    %v1105 = vmax.f32 %v1103, 0.0
    %v1106 = vmax.f32 %v1104, 0.0
    %v1107 = vld [vmem:[#allocation14] sm:$0xff]
    %v1108 = vld [vmem:[#allocation14 + $0x8] sm:$0xff]
    %v1109 = vld [vmem:[#allocation14 + $0x10] sm:$0xff]
    %v1110 = vld [vmem:[#allocation14 + $0x18] sm:$0xff]
    %v1111 = vld [vmem:[#allocation14 + $0x20] sm:$0xff]
    %v1112 = vld [vmem:[#allocation14 + $0x28] sm:$0xff]
    %v1113 = vld [vmem:[#allocation14 + $0x30] sm:$0xff]
    %v1114 = vld [vmem:[#allocation14 + $0x38] sm:$0xff]
    %v1116 = vsel %vm222, %v1105, 0
    %v1119 = vsel %vm222, %v1106, 0
    %1121 = vmatprep.subr.mxu0 0.0
    %1122 = vmatpush1.msra.mxu0 0.0
    %1123 = vmatprep.subr.mxu0 0.0
    %1124 = vmatpush1.msra.mxu0 0.0
    %1125 = vmatprep.subr.mxu0 0.0
    %1126 = vmatpush1.msra.mxu0 0.0
    %1127 = vmatprep.subr.mxu0 0.0
    %1128 = vmatpush1.msra.mxu0 0.0
    %1129 = vmatprep.subr.mxu0 0.0
    %1130 = vmatpush1.msra.mxu0 0.0
    %1131 = vmatprep.subr.mxu0 0.0
    %1132 = vmatpush1.msra.mxu0 0.0
    %1133 = vmatprep.subr.mxu0 0.0
    %1134 = vmatpush1.msra.mxu0 0.0
    %1135 = vmatprep.subr.mxu0 0.0
    %1136 = vmatpush1.msra.mxu0 0.0
    %1137 = vmatprep.subr.mxu0 0.0
    %1138 = vmatpush1.msra.mxu0 0.0
    %1139 = vmatprep.subr.mxu0 0.0
    %1140 = vmatpush1.msra.mxu0 0.0
    %1141 = vmatprep.subr.mxu0 0.0
    %1142 = vmatpush1.msra.mxu0 0.0
    %1143 = vmatprep.subr.mxu0 0.0
    %1144 = vmatpush1.msra.mxu0 0.0
    %1145 = vmatprep.subr.mxu0 %v1114
    %1146 = vmatpush1.msra.mxu0 %v1113
    %1147 = vmatprep.subr.mxu0 %v1112
    %1148 = vmatpush1.msra.mxu0 %v1111
    %1149 = vmatprep.subr.mxu0 %v1110
    %1150 = vmatpush1.msra.mxu0 %v1109
    %1151 = vmatprep.subr.mxu0 %v1108
    %1152 = vmatpush1.msra.mxu0 %v1107
    %1153 = vmatprep.subr.mxu0 0.0
    %1154 = vmatpush2.msra.mxu0 0.0
    %1155 = vmatprep.subr.mxu0 0.0
    %1156 = vmatpush2.msra.mxu0 0.0
    %1157 = vmatprep.subr.mxu0 0.0
    %1158 = vmatpush2.msra.mxu0 0.0
    %1159 = vmatprep.subr.mxu0 0.0
    %1160 = vmatpush2.msra.mxu0 0.0
    %1161 = vmatprep.subr.mxu0 0.0
    %1162 = vmatpush2.msra.mxu0 0.0
    %1163 = vmatprep.subr.mxu0 0.0
    %1164 = vmatpush2.msra.mxu0 0.0
    %1165 = vmatprep.subr.mxu0 0.0
    %1166 = vmatpush2.msra.mxu0 0.0
    %1167 = vmatprep.subr.mxu0 0.0
    %1168 = vmatpush2.msra.mxu0 0.0
    %1169 = vmatprep.subr.mxu0 0.0
    %1170 = vmatpush2.msra.mxu0 0.0
    %1171 = vmatprep.subr.mxu0 0.0
    %1172 = vmatpush2.msra.mxu0 0.0
    %1173 = vmatprep.subr.mxu0 0.0
    %1174 = vmatpush2.msra.mxu0 0.0
    %1175 = vmatprep.subr.mxu0 0.0
    %1176 = vmatpush2.msra.mxu0 0.0
    %1177 = vmatprep.subr.mxu0 0.0
    %1178 = vmatpush2.msra.mxu0 0.0
    %1179 = vmatprep.subr.mxu0 0.0
    %1180 = vmatpush2.msra.mxu0 0.0
    %1181 = vmatprep.subr.mxu0 0.0
    %1182 = vmatpush2.msra.mxu0 0.0
    %1183 = vmatprep.subr.mxu0 0.0
    %1184 = vmatpush2.msra.mxu0 0.0
    %1185 = vmatprep.mubr.f32.mxu0 0.0
    %1186 = vmatmul.mubr.f32.gmra.mxu0 %v1116
    %v1187 = vpop.f32.mrf.mxu0
    %v1188 = vadd.f32 0.0, %v1187
    %v1189 = vpop.f32.mrf.mxu0
    %v1190 = vadd.f32 0.0, %v1189
    %1191 = vmatprep.mubr.f32.mxu0 0.0
    %1192 = vmatmul.mubr.f32.gmra.mxu0 %v1119
    %v1193 = vpop.f32.mrf.mxu0
    %v1194 = vadd.f32 0.0, %v1193
    %v1195 = vpop.f32.mrf.mxu0
    %v1196 = vadd.f32 0.0, %v1195
    %1197 = vdwg.mxu0
    %v1198 = vld [vmem:[#allocation16] sm:$0x1]
    %v1200 = vlaneseq
    %v1201 = vshrl.u32 %v1200, 7
    %v1202 = vsub.s32 0, %v1201
    %v1203 = vrot.slane %v1198, %v1202
    %v1205 = vadd.f32 %v1188, %v1203
    %v1206 = vadd.f32 %v1194, %v1203
    %1207 = vst [vmem:[#allocation2] sm:$0xff] %v1205
    %1208 = vst [vmem:[#allocation2 + $0x8] sm:$0xff] %v1206
    %1209 = vst [vmem:[#allocation3] sm:$0xff] %v1190
    %1210 = vst [vmem:[#allocation3 + $0x8] sm:$0xff] %v1196
    %v1211 = vld [vmem:[#allocation3] sm:$0xff]
    %v1212 = vld [vmem:[#allocation3 + $0x8] sm:$0xff]
    %v1213 = vld [vmem:[#allocation17] sm:$0x1]
    %s1214 = sld [smem:[#allocation4]]
    loop: start=0, step=1, limit=2
    $region82: #{forward_batched.1} parent=1 // loop_pre_header
      _
    $region83: #{forward_batched.1} parent=1 // loop_header
      %s1216 = sphi 0, %s1220
      %p1217 = scmp.ge.s32.totalorder %s1216, 2
      %v1221 = vphi 0.0, %v1944
    $region84: #{forward_batched.1} parent=1 // loop_header_branch
      %1219 = sbr.rel (%p1217) target = $region88
    $region85: #{forward_batched.1} parent=1 // loop_body
      %s1222 = smul.u32 %s1216, 8
      %s1223 = scalar_lea.vmem [#allocation2], %s1222
      %v1224 = vld [vmem:[%s1223] sm:$0xff]
      %v1226 = vcombine.high %v1224, %v1224
      %v1228 = vunpack.c.l.s4 1966171168
      %v1229 = vunpack.c.0.s8 %v1228
      %v1230 = vlaneseq
      %v1231 = vshrl.u32 %v1230, 7
      %v1232 = vsub.s32 %v1229, %v1231
      %v1233 = vrot.slane %v1224, %v1232
      %v1235 = vunpack.c.l.s4 1966171168
      %v1236 = vunpack.c.0.s8 %v1235
      %v1237 = vlaneseq
      %v1238 = vshrl.u32 %v1237, 7
      %v1239 = vsub.s32 %v1236, %v1238
      %v1240 = vrot.slane %v1226, %v1239
      %v1241 = vcombine.high %v1233, %v1233
      %v1242 = vcombine.high %v1240, %v1240
      %v1244 = vunpack.c.l.s4 1966171168
      %v1245 = vunpack.c.0.s8 %v1244
      %v1246 = vlaneseq
      %v1247 = vshrl.u32 %v1246, 7
      %v1248 = vsub.s32 %v1245, %v1247
      %v1249 = vrot.slane %v1233, %v1248
      %v1251 = vunpack.c.l.s4 1966171168
      %v1252 = vunpack.c.0.s8 %v1251
      %v1253 = vlaneseq
      %v1254 = vshrl.u32 %v1253, 7
      %v1255 = vsub.s32 %v1252, %v1254
      %v1256 = vrot.slane %v1240, %v1255
      %v1258 = vunpack.c.l.s4 1966171168
      %v1259 = vunpack.c.0.s8 %v1258
      %v1260 = vlaneseq
      %v1261 = vshrl.u32 %v1260, 7
      %v1262 = vsub.s32 %v1259, %v1261
      %v1263 = vrot.slane %v1241, %v1262
      %v1265 = vunpack.c.l.s4 1966171168
      %v1266 = vunpack.c.0.s8 %v1265
      %v1267 = vlaneseq
      %v1268 = vshrl.u32 %v1267, 7
      %v1269 = vsub.s32 %v1266, %v1268
      %v1270 = vrot.slane %v1242, %v1269
      %v1271 = vcombine.high %v1249, %v1249
      %v1272 = vcombine.high %v1256, %v1256
      %v1273 = vcombine.high %v1263, %v1263
      %v1274 = vcombine.high %v1270, %v1270
      %v1275 = vlaneseq
      %v1276 = vshrl.u32 %v1275, 7
      %v1277 = vsub.s32 0, %v1276
      %v1278 = vrot.slane %v1249, %v1277
      %v1279 = vlaneseq
      %v1280 = vshrl.u32 %v1279, 7
      %v1281 = vsub.s32 0, %v1280
      %v1282 = vrot.slane %v1263, %v1281
      %v1283 = vlaneseq
      %v1284 = vshrl.u32 %v1283, 7
      %v1285 = vsub.s32 0, %v1284
      %v1286 = vrot.slane %v1271, %v1285
      %v1287 = vlaneseq
      %v1288 = vshrl.u32 %v1287, 7
      %v1289 = vsub.s32 0, %v1288
      %v1290 = vrot.slane %v1273, %v1289
      %v1291 = vlaneseq
      %v1292 = vshrl.u32 %v1291, 7
      %v1293 = vsub.s32 0, %v1292
      %v1294 = vrot.slane %v1256, %v1293
      %v1295 = vlaneseq
      %v1296 = vshrl.u32 %v1295, 7
      %v1297 = vsub.s32 0, %v1296
      %v1298 = vrot.slane %v1270, %v1297
      %v1299 = vlaneseq
      %v1300 = vshrl.u32 %v1299, 7
      %v1301 = vsub.s32 0, %v1300
      %v1302 = vrot.slane %v1272, %v1301
      %v1303 = vlaneseq
      %v1304 = vshrl.u32 %v1303, 7
      %v1305 = vsub.s32 0, %v1304
      %v1306 = vrot.slane %v1274, %v1305
      %v1315 = vadd.f32 %v1278, %v1211
      %v1316 = vadd.f32 %v1278, %v1212
      %v1317 = vadd.f32 %v1282, %v1211
      %v1318 = vadd.f32 %v1282, %v1212
      %v1319 = vadd.f32 %v1286, %v1211
      %v1320 = vadd.f32 %v1286, %v1212
      %v1321 = vadd.f32 %v1290, %v1211
      %v1322 = vadd.f32 %v1290, %v1212
      %v1323 = vadd.f32 %v1294, %v1211
      %v1324 = vadd.f32 %v1294, %v1212
      %v1325 = vadd.f32 %v1298, %v1211
      %v1326 = vadd.f32 %v1298, %v1212
      %v1327 = vadd.f32 %v1302, %v1211
      %v1328 = vadd.f32 %v1302, %v1212
      %v1329 = vadd.f32 %v1306, %v1211
      %v1330 = vadd.f32 %v1306, %v1212
      %v1331 = vmax.f32 %v1315, 0.0
      %v1332 = vmax.f32 %v1316, 0.0
      %v1333 = vmax.f32 %v1317, 0.0
      %v1334 = vmax.f32 %v1318, 0.0
      %v1335 = vmax.f32 %v1319, 0.0
      %v1336 = vmax.f32 %v1320, 0.0
      %v1337 = vmax.f32 %v1321, 0.0
      %v1338 = vmax.f32 %v1322, 0.0
      %v1339 = vmax.f32 %v1323, 0.0
      %v1340 = vmax.f32 %v1324, 0.0
      %v1341 = vmax.f32 %v1325, 0.0
      %v1342 = vmax.f32 %v1326, 0.0
      %v1343 = vmax.f32 %v1327, 0.0
      %v1344 = vmax.f32 %v1328, 0.0
      %v1345 = vmax.f32 %v1329, 0.0
      %v1346 = vmax.f32 %v1330, 0.0
      %v1348 = vlaneseq
      %v1349 = vshrl.u32 %v1348, 7
      %v1350 = vsub.s32 0, %v1349
      %v1351 = vrot.slane %v1213, %v1350
      %v1353 = vmul.f32 %v1331, %v1351
      %v1354 = vmul.f32 %v1332, %v1351
      %v1355 = vmul.f32 %v1333, %v1351
      %v1356 = vmul.f32 %v1334, %v1351
      %v1357 = vmul.f32 %v1335, %v1351
      %v1358 = vmul.f32 %v1336, %v1351
      %v1359 = vmul.f32 %v1337, %v1351
      %v1360 = vmul.f32 %v1338, %v1351
      %v1361 = vmul.f32 %v1339, %v1351
      %v1362 = vmul.f32 %v1340, %v1351
      %v1363 = vmul.f32 %v1341, %v1351
      %v1364 = vmul.f32 %v1342, %v1351
      %v1365 = vmul.f32 %v1343, %v1351
      %v1366 = vmul.f32 %v1344, %v1351
      %v1367 = vmul.f32 %v1345, %v1351
      %v1368 = vmul.f32 %v1346, %v1351
      %1369 = vadd.xlane.f32.xlu0 %v1353
      %v1370 = vpop.xlane.xlu0 %1369
      %1371 = vadd.xlane.f32.xlu0 %v1354
      %v1372 = vpop.xlane.xlu0 %1371
      %1373 = vadd.xlane.f32.xlu0 %v1355
      %v1374 = vpop.xlane.xlu0 %1373
      %1375 = vadd.xlane.f32.xlu0 %v1356
      %v1376 = vpop.xlane.xlu0 %1375
      %1377 = vadd.xlane.f32.xlu0 %v1357
      %v1378 = vpop.xlane.xlu0 %1377
      %1379 = vadd.xlane.f32.xlu0 %v1358
      %v1380 = vpop.xlane.xlu0 %1379
      %1381 = vadd.xlane.f32.xlu0 %v1359
      %v1382 = vpop.xlane.xlu0 %1381
      %1383 = vadd.xlane.f32.xlu0 %v1360
      %v1384 = vpop.xlane.xlu0 %1383
      %1385 = vadd.xlane.f32.xlu0 %v1361
      %v1386 = vpop.xlane.xlu0 %1385
      %1387 = vadd.xlane.f32.xlu0 %v1362
      %v1388 = vpop.xlane.xlu0 %1387
      %1389 = vadd.xlane.f32.xlu0 %v1363
      %v1390 = vpop.xlane.xlu0 %1389
      %1391 = vadd.xlane.f32.xlu0 %v1364
      %v1392 = vpop.xlane.xlu0 %1391
      %1393 = vadd.xlane.f32.xlu0 %v1365
      %v1394 = vpop.xlane.xlu0 %1393
      %1395 = vadd.xlane.f32.xlu0 %v1366
      %v1396 = vpop.xlane.xlu0 %1395
      %1397 = vadd.xlane.f32.xlu0 %v1367
      %v1398 = vpop.xlane.xlu0 %1397
      %1399 = vadd.xlane.f32.xlu0 %v1368
      %v1400 = vpop.xlane.xlu0 %1399
      %v1401 = vstv %s1214
      %v1402 = vadd.f32 %v1370, %v1401
      %v1403 = vadd.f32 %v1372, %v1401
      %v1404 = vadd.f32 %v1374, %v1401
      %v1405 = vadd.f32 %v1376, %v1401
      %v1406 = vadd.f32 %v1378, %v1401
      %v1407 = vadd.f32 %v1380, %v1401
      %v1408 = vadd.f32 %v1382, %v1401
      %v1409 = vadd.f32 %v1384, %v1401
      %v1410 = vadd.f32 %v1386, %v1401
      %v1411 = vadd.f32 %v1388, %v1401
      %v1412 = vadd.f32 %v1390, %v1401
      %v1413 = vadd.f32 %v1392, %v1401
      %v1414 = vadd.f32 %v1394, %v1401
      %v1415 = vadd.f32 %v1396, %v1401
      %v1416 = vadd.f32 %v1398, %v1401
      %v1417 = vadd.f32 %v1400, %v1401
      %v1434 = vlaneseq
      %v1435 = vand.u32 %v1434, 127
      %v1436 = vlaneseq
      %v1437 = vshrl.u32 %v1436, 7
      %v1438 = vsub.s32 %v1435, %v1437
      %v1439 = vrot.slane %v1402, %v1438
      %v1440 = vadd.s32 %v1435, 4294967288
      %v1441 = vlaneseq
      %v1442 = vshrl.u32 %v1441, 7
      %v1443 = vsub.s32 %v1440, %v1442
      %v1444 = vrot.slane %v1403, %v1443
      %vm1445 = vcmask 130112
      %v1446 = vsel %vm1445, %v1444, %v1439
      %v1447 = vlaneseq
      %v1448 = vshrl.u32 %v1447, 7
      %v1449 = vsub.s32 %v1435, %v1448
      %v1450 = vrot.slane %v1404, %v1449
      %v1451 = vlaneseq
      %v1452 = vshrl.u32 %v1451, 7
      %v1453 = vsub.s32 %v1440, %v1452
      %v1454 = vrot.slane %v1405, %v1453
      %v1455 = vsel %vm1445, %v1454, %v1450
      %v1456 = vlaneseq
      %v1457 = vshrl.u32 %v1456, 7
      %v1458 = vsub.s32 %v1435, %v1457
      %v1459 = vrot.slane %v1406, %v1458
      %v1460 = vlaneseq
      %v1461 = vshrl.u32 %v1460, 7
      %v1462 = vsub.s32 %v1440, %v1461
      %v1463 = vrot.slane %v1407, %v1462
      %v1464 = vsel %vm1445, %v1463, %v1459
      %v1465 = vlaneseq
      %v1466 = vshrl.u32 %v1465, 7
      %v1467 = vsub.s32 %v1435, %v1466
      %v1468 = vrot.slane %v1408, %v1467
      %v1469 = vlaneseq
      %v1470 = vshrl.u32 %v1469, 7
      %v1471 = vsub.s32 %v1440, %v1470
      %v1472 = vrot.slane %v1409, %v1471
      %v1473 = vsel %vm1445, %v1472, %v1468
      %v1474 = vlaneseq
      %v1475 = vshrl.u32 %v1474, 7
      %v1476 = vsub.s32 %v1435, %v1475
      %v1477 = vrot.slane %v1410, %v1476
      %v1478 = vlaneseq
      %v1479 = vshrl.u32 %v1478, 7
      %v1480 = vsub.s32 %v1440, %v1479
      %v1481 = vrot.slane %v1411, %v1480
      %v1482 = vsel %vm1445, %v1481, %v1477
      %v1483 = vlaneseq
      %v1484 = vshrl.u32 %v1483, 7
      %v1485 = vsub.s32 %v1435, %v1484
      %v1486 = vrot.slane %v1412, %v1485
      %v1487 = vlaneseq
      %v1488 = vshrl.u32 %v1487, 7
      %v1489 = vsub.s32 %v1440, %v1488
      %v1490 = vrot.slane %v1413, %v1489
      %v1491 = vsel %vm1445, %v1490, %v1486
      %v1492 = vlaneseq
      %v1493 = vshrl.u32 %v1492, 7
      %v1494 = vsub.s32 %v1435, %v1493
      %v1495 = vrot.slane %v1414, %v1494
      %v1496 = vlaneseq
      %v1497 = vshrl.u32 %v1496, 7
      %v1498 = vsub.s32 %v1440, %v1497
      %v1499 = vrot.slane %v1415, %v1498
      %v1500 = vsel %vm1445, %v1499, %v1495
      %v1501 = vlaneseq
      %v1502 = vshrl.u32 %v1501, 7
      %v1503 = vsub.s32 %v1435, %v1502
      %v1504 = vrot.slane %v1416, %v1503
      %v1505 = vlaneseq
      %v1506 = vshrl.u32 %v1505, 7
      %v1507 = vsub.s32 %v1440, %v1506
      %v1508 = vrot.slane %v1417, %v1507
      %v1509 = vsel %vm1445, %v1508, %v1504
      %vm1510 = vcmask 1041409
      %v1511 = vsel %vm1510, %v1455, %v1446
      %vm1512 = vcmask 1042434
      %v1513 = vsel %vm1512, %v1464, %v1511
      %vm1514 = vcmask 1043459
      %v1515 = vsel %vm1514, %v1473, %v1513
      %vm1516 = vcmask 1044484
      %v1517 = vsel %vm1516, %v1482, %v1515
      %vm1518 = vcmask 1045509
      %v1519 = vsel %vm1518, %v1491, %v1517
      %vm1520 = vcmask 1046534
      %v1521 = vsel %vm1520, %v1500, %v1519
      %vm1522 = vcmask 1047559
      %v1523 = vsel %vm1522, %v1509, %v1521
      %s1525 = scalar_lea.vmem [#allocation19], %s1222
      %1526 = vst.msk [vmem:[%s1525] sm:$0xff] %vm304, %v1523
      %s1527 = scalar_lea.vmem %s1, %s1222
      %v1528 = vld [vmem:[%s1527] sm:$0xff]
      %v1530 = vlaneseq
      %v1531 = vshrl.u32 %v1530, 7
      %v1532 = vsub.s32 0, %v1531
      %v1533 = vrot.slane %v1528, %v1532
      %1535 = vbcast.lane.b32.xlu0 %v1533, 256
      %v1536 = vpop.permute.xlu0 %1535
      %s1538 = sor.u32 256, 8
      %1539 = vbcast.lane.b32.xlu0 %v1533, %s1538
      %v1540 = vpop.permute.xlu0 %1539
      %v1541 = vlaneseq
      %v1542 = vshrl.u32 %v1541, 7
      %v1543 = vsub.s32 1, %v1542
      %v1544 = vrot.slane %v1528, %v1543
      %1546 = vbcast.lane.b32.xlu0 %v1544, 256
      %v1547 = vpop.permute.xlu0 %1546
      %s1549 = sor.u32 256, 8
      %1550 = vbcast.lane.b32.xlu0 %v1544, %s1549
      %v1551 = vpop.permute.xlu0 %1550
      %v1552 = vlaneseq
      %v1553 = vshrl.u32 %v1552, 7
      %v1554 = vsub.s32 2, %v1553
      %v1555 = vrot.slane %v1528, %v1554
      %1557 = vbcast.lane.b32.xlu0 %v1555, 256
      %v1558 = vpop.permute.xlu0 %1557
      %s1560 = sor.u32 256, 8
      %1561 = vbcast.lane.b32.xlu0 %v1555, %s1560
      %v1562 = vpop.permute.xlu0 %1561
      %v1563 = vlaneseq
      %v1564 = vshrl.u32 %v1563, 7
      %v1565 = vsub.s32 3, %v1564
      %v1566 = vrot.slane %v1528, %v1565
      %1568 = vbcast.lane.b32.xlu0 %v1566, 256
      %v1569 = vpop.permute.xlu0 %1568
      %s1571 = sor.u32 256, 8
      %1572 = vbcast.lane.b32.xlu0 %v1566, %s1571
      %v1573 = vpop.permute.xlu0 %1572
      %v1574 = vlaneseq
      %v1575 = vshrl.u32 %v1574, 7
      %v1576 = vsub.s32 4, %v1575
      %v1577 = vrot.slane %v1528, %v1576
      %1579 = vbcast.lane.b32.xlu0 %v1577, 256
      %v1580 = vpop.permute.xlu0 %1579
      %s1582 = sor.u32 256, 8
      %1583 = vbcast.lane.b32.xlu0 %v1577, %s1582
      %v1584 = vpop.permute.xlu0 %1583
      %v1585 = vlaneseq
      %v1586 = vshrl.u32 %v1585, 7
      %v1587 = vsub.s32 5, %v1586
      %v1588 = vrot.slane %v1528, %v1587
      %1590 = vbcast.lane.b32.xlu0 %v1588, 256
      %v1591 = vpop.permute.xlu0 %1590
      %s1593 = sor.u32 256, 8
      %1594 = vbcast.lane.b32.xlu0 %v1588, %s1593
      %v1595 = vpop.permute.xlu0 %1594
      %v1596 = vlaneseq
      %v1597 = vshrl.u32 %v1596, 7
      %v1598 = vsub.s32 6, %v1597
      %v1599 = vrot.slane %v1528, %v1598
      %1601 = vbcast.lane.b32.xlu0 %v1599, 256
      %v1602 = vpop.permute.xlu0 %1601
      %s1604 = sor.u32 256, 8
      %1605 = vbcast.lane.b32.xlu0 %v1599, %s1604
      %v1606 = vpop.permute.xlu0 %1605
      %v1607 = vlaneseq
      %v1608 = vshrl.u32 %v1607, 7
      %v1609 = vsub.s32 7, %v1608
      %v1610 = vrot.slane %v1528, %v1609
      %1612 = vbcast.lane.b32.xlu0 %v1610, 256
      %v1613 = vpop.permute.xlu0 %1612
      %s1615 = sor.u32 256, 8
      %1616 = vbcast.lane.b32.xlu0 %v1610, %s1615
      %v1617 = vpop.permute.xlu0 %1616
      %v1634 = vmul.f32 %v1402, %v1536
      %v1635 = vmul.f32 %v1403, %v1540
      %v1636 = vmul.f32 %v1404, %v1547
      %v1637 = vmul.f32 %v1405, %v1551
      %v1638 = vmul.f32 %v1406, %v1558
      %v1639 = vmul.f32 %v1407, %v1562
      %v1640 = vmul.f32 %v1408, %v1569
      %v1641 = vmul.f32 %v1409, %v1573
      %v1642 = vmul.f32 %v1410, %v1580
      %v1643 = vmul.f32 %v1411, %v1584
      %v1644 = vmul.f32 %v1412, %v1591
      %v1645 = vmul.f32 %v1413, %v1595
      %v1646 = vmul.f32 %v1414, %v1602
      %v1647 = vmul.f32 %v1415, %v1606
      %v1648 = vmul.f32 %v1416, %v1613
      %v1649 = vmul.f32 %v1417, %v1617
      %s1650 = scalar_lea.vmem %s2, %s1222
      %v1651 = vld [vmem:[%s1650] sm:$0xff]
      %v1653 = vlaneseq
      %v1654 = vshrl.u32 %v1653, 7
      %v1655 = vsub.s32 0, %v1654
      %v1656 = vrot.slane %v1651, %v1655
      %1658 = vbcast.lane.b32.xlu0 %v1656, 256
      %v1659 = vpop.permute.xlu0 %1658
      %s1661 = sor.u32 256, 8
      %1662 = vbcast.lane.b32.xlu0 %v1656, %s1661
      %v1663 = vpop.permute.xlu0 %1662
      %v1664 = vlaneseq
      %v1665 = vshrl.u32 %v1664, 7
      %v1666 = vsub.s32 1, %v1665
      %v1667 = vrot.slane %v1651, %v1666
      %1669 = vbcast.lane.b32.xlu0 %v1667, 256
      %v1670 = vpop.permute.xlu0 %1669
      %s1672 = sor.u32 256, 8
      %1673 = vbcast.lane.b32.xlu0 %v1667, %s1672
      %v1674 = vpop.permute.xlu0 %1673
      %v1675 = vlaneseq
      %v1676 = vshrl.u32 %v1675, 7
      %v1677 = vsub.s32 2, %v1676
      %v1678 = vrot.slane %v1651, %v1677
      %1680 = vbcast.lane.b32.xlu0 %v1678, 256
      %v1681 = vpop.permute.xlu0 %1680
      %s1683 = sor.u32 256, 8
      %1684 = vbcast.lane.b32.xlu0 %v1678, %s1683
      %v1685 = vpop.permute.xlu0 %1684
      %v1686 = vlaneseq
      %v1687 = vshrl.u32 %v1686, 7
      %v1688 = vsub.s32 3, %v1687
      %v1689 = vrot.slane %v1651, %v1688
      %1691 = vbcast.lane.b32.xlu0 %v1689, 256
      %v1692 = vpop.permute.xlu0 %1691
      %s1694 = sor.u32 256, 8
      %1695 = vbcast.lane.b32.xlu0 %v1689, %s1694
      %v1696 = vpop.permute.xlu0 %1695
      %v1697 = vlaneseq
      %v1698 = vshrl.u32 %v1697, 7
      %v1699 = vsub.s32 4, %v1698
      %v1700 = vrot.slane %v1651, %v1699
      %1702 = vbcast.lane.b32.xlu0 %v1700, 256
      %v1703 = vpop.permute.xlu0 %1702
      %s1705 = sor.u32 256, 8
      %1706 = vbcast.lane.b32.xlu0 %v1700, %s1705
      %v1707 = vpop.permute.xlu0 %1706
      %v1708 = vlaneseq
      %v1709 = vshrl.u32 %v1708, 7
      %v1710 = vsub.s32 5, %v1709
      %v1711 = vrot.slane %v1651, %v1710
      %1713 = vbcast.lane.b32.xlu0 %v1711, 256
      %v1714 = vpop.permute.xlu0 %1713
      %s1716 = sor.u32 256, 8
      %1717 = vbcast.lane.b32.xlu0 %v1711, %s1716
      %v1718 = vpop.permute.xlu0 %1717
      %v1719 = vlaneseq
      %v1720 = vshrl.u32 %v1719, 7
      %v1721 = vsub.s32 6, %v1720
      %v1722 = vrot.slane %v1651, %v1721
      %1724 = vbcast.lane.b32.xlu0 %v1722, 256
      %v1725 = vpop.permute.xlu0 %1724
      %s1727 = sor.u32 256, 8
      %1728 = vbcast.lane.b32.xlu0 %v1722, %s1727
      %v1729 = vpop.permute.xlu0 %1728
      %v1730 = vlaneseq
      %v1731 = vshrl.u32 %v1730, 7
      %v1732 = vsub.s32 7, %v1731
      %v1733 = vrot.slane %v1651, %v1732
      %1735 = vbcast.lane.b32.xlu0 %v1733, 256
      %v1736 = vpop.permute.xlu0 %1735
      %s1738 = sor.u32 256, 8
      %1739 = vbcast.lane.b32.xlu0 %v1733, %s1738
      %v1740 = vpop.permute.xlu0 %1739
      %v1757 = vsub.f32 %v1634, %v1659
      %v1758 = vsub.f32 %v1635, %v1663
      %v1759 = vsub.f32 %v1636, %v1670
      %v1760 = vsub.f32 %v1637, %v1674
      %v1761 = vsub.f32 %v1638, %v1681
      %v1762 = vsub.f32 %v1639, %v1685
      %v1763 = vsub.f32 %v1640, %v1692
      %v1764 = vsub.f32 %v1641, %v1696
      %v1765 = vsub.f32 %v1642, %v1703
      %v1766 = vsub.f32 %v1643, %v1707
      %v1767 = vsub.f32 %v1644, %v1714
      %v1768 = vsub.f32 %v1645, %v1718
      %v1769 = vsub.f32 %v1646, %v1725
      %v1770 = vsub.f32 %v1647, %v1729
      %v1771 = vsub.f32 %v1648, %v1736
      %v1772 = vsub.f32 %v1649, %v1740
      %v1773 = vmul.f32 %v1757, %v1757
      %v1774 = vmul.f32 %v1758, %v1758
      %v1775 = vmul.f32 %v1759, %v1759
      %v1776 = vmul.f32 %v1760, %v1760
      %v1777 = vmul.f32 %v1761, %v1761
      %v1778 = vmul.f32 %v1762, %v1762
      %v1779 = vmul.f32 %v1763, %v1763
      %v1780 = vmul.f32 %v1764, %v1764
      %v1781 = vmul.f32 %v1765, %v1765
      %v1782 = vmul.f32 %v1766, %v1766
      %v1783 = vmul.f32 %v1767, %v1767
      %v1784 = vmul.f32 %v1768, %v1768
      %v1785 = vmul.f32 %v1769, %v1769
      %v1786 = vmul.f32 %v1770, %v1770
      %v1787 = vmul.f32 %v1771, %v1771
      %v1788 = vmul.f32 %v1772, %v1772
      %1805 = vset.pattern.permute.xlu0 0
      %1806 = vperm.xlu0 %1805, %v1773
      %v1807 = vpop.permute.xlu0 %1806
      %1808 = vset.pattern.permute.xlu0 0
      %1809 = vperm.xlu0 %1808, %v1774
      %v1810 = vpop.permute.xlu0 %1809
      %1811 = vset.pattern.permute.xlu0 0
      %1812 = vperm.xlu0 %1811, %v1775
      %v1813 = vpop.permute.xlu0 %1812
      %1814 = vset.pattern.permute.xlu0 0
      %1815 = vperm.xlu0 %1814, %v1776
      %v1816 = vpop.permute.xlu0 %1815
      %1817 = vset.pattern.permute.xlu0 0
      %1818 = vperm.xlu0 %1817, %v1777
      %v1819 = vpop.permute.xlu0 %1818
      %1820 = vset.pattern.permute.xlu0 0
      %1821 = vperm.xlu0 %1820, %v1778
      %v1822 = vpop.permute.xlu0 %1821
      %1823 = vset.pattern.permute.xlu0 0
      %1824 = vperm.xlu0 %1823, %v1779
      %v1825 = vpop.permute.xlu0 %1824
      %1826 = vset.pattern.permute.xlu0 0
      %1827 = vperm.xlu0 %1826, %v1780
      %v1828 = vpop.permute.xlu0 %1827
      %1829 = vset.pattern.permute.xlu0 0
      %1830 = vperm.xlu0 %1829, %v1781
      %v1831 = vpop.permute.xlu0 %1830
      %1832 = vset.pattern.permute.xlu0 0
      %1833 = vperm.xlu0 %1832, %v1782
      %v1834 = vpop.permute.xlu0 %1833
      %1835 = vset.pattern.permute.xlu0 0
      %1836 = vperm.xlu0 %1835, %v1783
      %v1837 = vpop.permute.xlu0 %1836
      %1838 = vset.pattern.permute.xlu0 0
      %1839 = vperm.xlu0 %1838, %v1784
      %v1840 = vpop.permute.xlu0 %1839
      %1841 = vset.pattern.permute.xlu0 0
      %1842 = vperm.xlu0 %1841, %v1785
      %v1843 = vpop.permute.xlu0 %1842
      %1844 = vset.pattern.permute.xlu0 0
      %1845 = vperm.xlu0 %1844, %v1786
      %v1846 = vpop.permute.xlu0 %1845
      %1847 = vset.pattern.permute.xlu0 0
      %1848 = vperm.xlu0 %1847, %v1787
      %v1849 = vpop.permute.xlu0 %1848
      %1850 = vset.pattern.permute.xlu0 0
      %1851 = vperm.xlu0 %1850, %v1788
      %v1852 = vpop.permute.xlu0 %1851
      %v1853 = vlaneseq
      %v1854 = vshrl.u32 %v1853, 7
      %v1855 = vsub.s32 %v1435, %v1854
      %v1856 = vrot.slane %v1807, %v1855
      %v1857 = vlaneseq
      %v1858 = vshrl.u32 %v1857, 7
      %v1859 = vsub.s32 %v1440, %v1858
      %v1860 = vrot.slane %v1810, %v1859
      %v1861 = vsel %vm1445, %v1860, %v1856
      %v1862 = vlaneseq
      %v1863 = vshrl.u32 %v1862, 7
      %v1864 = vsub.s32 %v1435, %v1863
      %v1865 = vrot.slane %v1813, %v1864
      %v1866 = vlaneseq
      %v1867 = vshrl.u32 %v1866, 7
      %v1868 = vsub.s32 %v1440, %v1867
      %v1869 = vrot.slane %v1816, %v1868
      %v1870 = vsel %vm1445, %v1869, %v1865
      %v1871 = vlaneseq
      %v1872 = vshrl.u32 %v1871, 7
      %v1873 = vsub.s32 %v1435, %v1872
      %v1874 = vrot.slane %v1819, %v1873
      %v1875 = vlaneseq
      %v1876 = vshrl.u32 %v1875, 7
      %v1877 = vsub.s32 %v1440, %v1876
      %v1878 = vrot.slane %v1822, %v1877
      %v1879 = vsel %vm1445, %v1878, %v1874
      %v1880 = vlaneseq
      %v1881 = vshrl.u32 %v1880, 7
      %v1882 = vsub.s32 %v1435, %v1881
      %v1883 = vrot.slane %v1825, %v1882
      %v1884 = vlaneseq
      %v1885 = vshrl.u32 %v1884, 7
      %v1886 = vsub.s32 %v1440, %v1885
      %v1887 = vrot.slane %v1828, %v1886
      %v1888 = vsel %vm1445, %v1887, %v1883
      %v1889 = vlaneseq
      %v1890 = vshrl.u32 %v1889, 7
      %v1891 = vsub.s32 %v1435, %v1890
      %v1892 = vrot.slane %v1831, %v1891
      %v1893 = vlaneseq
      %v1894 = vshrl.u32 %v1893, 7
      %v1895 = vsub.s32 %v1440, %v1894
      %v1896 = vrot.slane %v1834, %v1895
      %v1897 = vsel %vm1445, %v1896, %v1892
      %v1898 = vlaneseq
      %v1899 = vshrl.u32 %v1898, 7
      %v1900 = vsub.s32 %v1435, %v1899
      %v1901 = vrot.slane %v1837, %v1900
      %v1902 = vlaneseq
      %v1903 = vshrl.u32 %v1902, 7
      %v1904 = vsub.s32 %v1440, %v1903
      %v1905 = vrot.slane %v1840, %v1904
      %v1906 = vsel %vm1445, %v1905, %v1901
      %v1907 = vlaneseq
      %v1908 = vshrl.u32 %v1907, 7
      %v1909 = vsub.s32 %v1435, %v1908
      %v1910 = vrot.slane %v1843, %v1909
      %v1911 = vlaneseq
      %v1912 = vshrl.u32 %v1911, 7
      %v1913 = vsub.s32 %v1440, %v1912
      %v1914 = vrot.slane %v1846, %v1913
      %v1915 = vsel %vm1445, %v1914, %v1910
      %v1916 = vlaneseq
      %v1917 = vshrl.u32 %v1916, 7
      %v1918 = vsub.s32 %v1435, %v1917
      %v1919 = vrot.slane %v1849, %v1918
      %v1920 = vlaneseq
      %v1921 = vshrl.u32 %v1920, 7
      %v1922 = vsub.s32 %v1440, %v1921
      %v1923 = vrot.slane %v1852, %v1922
      %v1924 = vsel %vm1445, %v1923, %v1919
      %v1925 = vsel %vm1510, %v1870, %v1861
      %v1926 = vsel %vm1512, %v1879, %v1925
      %v1927 = vsel %vm1514, %v1888, %v1926
      %v1928 = vsel %vm1516, %v1897, %v1927
      %v1929 = vsel %vm1518, %v1906, %v1928
      %v1930 = vsel %vm1520, %v1915, %v1929
      %v1931 = vsel %vm1522, %v1924, %v1930
      %v1933 = vsel %vm304, %v1931, 0.0
      %1934 = vadd.xlane.f32.xlu0 %v1933
      %v1935 = vpop.xlane.xlu0 %1934
      %v1936 = vrot.slane %v1935, 4
      %v1937 = vadd.f32 %v1935, %v1936
      %v1938 = vrot.slane %v1937, 2
      %v1939 = vadd.f32 %v1937, %v1938
      %v1940 = vrot.slane %v1939, 1
      %v1941 = vadd.f32 %v1939, %v1940
      %s1942 = vtos %v1941
      %v1943 = vstv %s1942
      %v1944 = vadd.f32 %v1221, %v1943
    $region86: #{forward_batched.1} parent=1 // loop_footer
      %s1220 = sadd.s32 1, %s1216
    $region87: #{forward_batched.1} parent=1 // loop_footer_branch
      %1215 = sbr.rel target = $region83
    $region88: #{forward_batched.1} parent=1 // loop_exit
      _
    %v1945 = vmul.f32 %v1221, 0.00390625
    %vm1946 = vcmask 0
    %1947 = vst.msk [vmem:[#allocation20] sm:$0x1] %vm1946, %v1945
    // Predicated region
    $region89: #{forward_batched.1} parent=1 // pred_check
      _
    $region90: #{forward_batched.1} parent=1 // pred_check_branch
      %1949 = sbr.rel (0) target = $region92
    $region91: #{forward_batched.1} parent=1 // pred_region
      %s1951 = ssub.s32 256, 256
      %1952 = vsyncadd [#allocation7], %s1951
      %s1953 = sshll.u32 [#allocation19], 4
      %s1954 = int_to_ptr.vmem [resolvable:$true] %s1953
      %1959 = dma.vmem_to_hbm [thread:$0]  %s1954, 256, %s12, [#allocation7], 128, 128, 8
    $region92: #{forward_batched.1} parent=1 // pred_fallthru
      _
    // Predicated region
    $region93: #{forward_batched.1} parent=1 // pred_check
      _
    $region94: #{forward_batched.1} parent=1 // pred_check_branch
      %1961 = sbr.rel (0) target = $region96
    $region95: #{forward_batched.1} parent=1 // pred_region
      %s1963 = ssub.s32 16, 16
      %1964 = vsyncadd [#allocation21], %s1963
      %s1966 = sshll.u32 [#allocation20], 4
      %s1967 = int_to_ptr.vmem [resolvable:$true] %s1966
      %1969 = dma.vmem_to_hbm [thread:$0]  %s1967, 16, %s13, [#allocation21]
    $region96: #{forward_batched.1} parent=1 // pred_fallthru
      _
    // Predicated region
    $region97: #{forward_batched.1} parent=1 // pred_check
      _
    $region98: #{forward_batched.1} parent=1 // pred_check_branch
      %1971 = sbr.rel (0) target = $region100
    $region99: #{forward_batched.1} parent=1 // pred_region
      %1972 = dma.done [#allocation7], 256
    $region100: #{forward_batched.1} parent=1 // pred_fallthru
      _
    // Predicated region
    $region101: #{forward_batched.1} parent=1 // pred_check
      _
    $region102: #{forward_batched.1} parent=1 // pred_check_branch
      %1974 = sbr.rel (0) target = $region104
    $region103: #{forward_batched.1} parent=1 // pred_region
      %1975 = dma.done [#allocation21], 16
    $region104: #{forward_batched.1} parent=1 // pred_fallthru
      _
    %1976 = vsyncpa [#allocation6], 1
    %1977 = vsyncpa [#allocation9], 1
    %1978 = vsyncpa [#allocation12], 1
    %1979 = vsyncpa [#allocation15], 1
    %1980 = vsyncpa [#allocation18], 1
    %1981 = vsyncpa [#allocation7], 1
    %1982 = vsyncpa [#allocation21], 1

</llo_original>
